<compile_context>
chip_gen: v7x
topology: tpu7x:2x2x1
jax: 0.10.0
libtpu: 0.0.40
codegen_flags: <defaults>
</compile_context>

<pallas_src>
import math

import jax
import jax.numpy as jnp
from jax import lax
from jax.experimental import pallas as pl
from jax.experimental.pallas import tpu as pltpu


def _is_pow2(x):
    if x == 0:
        return False
    m, _ = math.frexp(abs(float(x)))
    return m == 0.5


def _make_attn_kernel(use_scaled, use_mask, scale, fast_bf16):
    """Kernel factory; static flags select the scaled / mask / bf16 paths."""
    scale = float(scale) if use_scaled else 1.0
    scale_pow2 = use_scaled and _is_pow2(scale)
    inv_scale = (1.0 / scale) if use_scaled else 1.0

    def kernel(*refs):
        # ref order: q, k, v, (mask), ctx_out, attn_out
        q_ref, k_ref, v_ref = refs[0], refs[1], refs[2]
        idx = 3
        if use_mask:
            mask_ref = refs[idx]
            idx += 1
        ctx_ref, attn_ref = refs[idx], refs[idx + 1]

        q = q_ref[...]  # (TQ, D)
        k = k_ref[...]  # (Lk, D)
        v = v_ref[...]  # (Lk, D)

        # Optional: feed the MXU bf16 operands (f32 accumulation kept below).
        if fast_bf16 and q.dtype == jnp.float32:
            q = q.astype(jnp.bfloat16)
            k = k.astype(jnp.bfloat16)

        # scores = Q @ K^T without materializing K^T: contract last axis of both.
        scores = lax.dot_general(
            q, k,
            dimension_numbers=(((1,), (1,)), ((), ())),
            preferred_element_type=jnp.float32,
        )  # (TQ, Lk) f32

        if use_scaled:
            # torch `//` (floor division). Power-of-two divisors use an exact
            # reciprocal multiply; otherwise a true division preserves floor().
            if scale_pow2:
                scores = jnp.floor(scores * jnp.float32(inv_scale))
            else:
                scores = jnp.floor(scores / jnp.float32(scale))

        if use_mask:
            # masked_fill(mask, -inf): fully-masked rows yield NaN, same as torch.
            scores = jnp.where(mask_ref[...] != 0, -jnp.inf, scores)

        # softmax along the key axis (dim=2 of the full tensor)
        m = jnp.max(scores, axis=-1, keepdims=True)
        p = jnp.exp(scores - m)                  # (TQ, Lk) f32
        s = jnp.sum(p, axis=-1, keepdims=True)   # (TQ, 1)
        inv_s = 1.0 / s                          # exact: returned attention rows sum to 1

        # TODO(synk): nn.Dropout(attention_dropout=0.0) is identity; dropout p>0 not implemented.

        attn_ref[...] = (p * inv_s).astype(attn_ref.dtype)

        # context = softmax(scores) @ V; normalize the small (TQ, D) result instead of
        # the (TQ, Lk) probabilities on the matmul input path.
        pv_in = jnp.bfloat16 if (fast_bf16 and v.dtype == jnp.float32) else v.dtype
        ctx = jnp.dot(p.astype(pv_in), v.astype(pv_in),
                      preferred_element_type=jnp.float32)
        ctx_ref[...] = (ctx * inv_s).astype(ctx_ref.dtype)

    return kernel


def _vmem_capacity_bytes():
    """Per-core VMEM capacity; conservative 64 MiB (v7x) fallback if unknown."""
    try:
        info = pltpu.get_tpu_info()
        cap = int(getattr(info, "vmem_capacity_bytes", 0) or 0)
        if cap > 0:
            return cap
    except Exception:
        pass
    return 64 * 1024 * 1024


def _pick_tile_q(Lq, Lk, D, itemsizes, budget_bytes, target, sub):
    """Largest q-tile (multiple of `sub`, <= target) whose VMEM footprint fits."""
    q_b, k_b, v_b, attn_b, ctx_b, mask_b = itemsizes
    if Lq <= target:
        return Lq  # single full-extent block (always legal)

    def footprint(tq):
        return (2 * tq * D * q_b                 # Q tile (double-buffered)
                + 2 * Lk * D * (k_b + v_b)       # K, V resident blocks (double-buffered)
                + 2 * tq * Lk * attn_b           # attention-out tile
                + 2 * tq * D * ctx_b             # context-out tile
                + 2 * tq * Lk * mask_b           # mask tile (0 if no mask)
                + 2 * tq * Lk * 4)               # f32 scores / probs intermediates

    t = max(sub, target - target % sub)
    while t > sub and footprint(t) > budget_bytes:
        t -= sub
    return t
    # TODO(synk): for very long Lk even the smallest tile may not fit; a flash-style
    # Lk-tiled online softmax would be needed there (out of scope for this module).


def scaled_dot_product_attention(Q, K, V, scaled=None, attn_mask=None, *,
                                 tile_q=256, fast_bf16_matmul=False,
                                 attn_out_dtype=None):
    """Pallas implementation of ScaledDotProductAttention.forward.

    Q: (B, Lq, D), K/V: (B, Lk, D); attn_mask: optional bool (B, Lq, Lk) (True = mask out);
    scaled: optional static scalar applied with torch floor-division semantics.
    Returns (context (B, Lq, D), attention (B, Lq, Lk)).
    """
    B, Lq, D = Q.shape
    _, Lk, _ = K.shape
    assert K.shape == (B, Lk, D) and V.shape == (B, Lk, D)

    use_scaled = bool(scaled)            # mirrors torch `if scaled:` truthiness
    use_mask = attn_mask is not None

    attn_dtype = attn_out_dtype if attn_out_dtype is not None else jnp.result_type(Q.dtype, K.dtype)
    ctx_dtype = jnp.result_type(Q.dtype, K.dtype, V.dtype)

    # ---- Pad D < 128 so the MXU contraction depth / ctx lane width is full. ----
    D_p = 128 if D < 128 else D
    if D_p != D:
        pad_d = D_p - D
        Q = jnp.pad(Q, ((0, 0), (0, 0), (0, pad_d)))   # zero columns: scores unchanged
        K = jnp.pad(K, ((0, 0), (0, 0), (0, pad_d)))
        V = jnp.pad(V, ((0, 0), (0, 0), (0, pad_d)))   # extra ctx columns sliced off below

    # ---- Generation-aware VMEM budget and q-tile choice. ----
    vmem_cap = _vmem_capacity_bytes()
    budget = int(vmem_cap * 0.7)
    q_b = jnp.dtype(Q.dtype).itemsize
    k_b = jnp.dtype(K.dtype).itemsize
    v_b = jnp.dtype(V.dtype).itemsize
    attn_b = jnp.dtype(attn_dtype).itemsize
    ctx_b = jnp.dtype(ctx_dtype).itemsize
    mask_b = 1 if use_mask else 0
    sub = {4: 8, 2: 16, 1: 32}.get(q_b, 8)             # dtype-aware sublane multiple
    if use_mask:
        sub = max(sub, 32)                              # int8 mask packs 32 rows/sublane tile
    TQ = _pick_tile_q(Lq, Lk, D_p, (q_b, k_b, v_b, attn_b, ctx_b, mask_b),
                      budget, tile_q, sub)

    # ---- Pad Lq so it divides evenly into q-tiles (no full-Lq fallback). ----
    n_q = pl.cdiv(Lq, TQ)
    Lq_p = n_q * TQ
    if Lq_p != Lq:
        Q = jnp.pad(Q, ((0, 0), (0, Lq_p - Lq), (0, 0)))

    kernel = _make_attn_kernel(use_scaled, use_mask,
                               scaled if use_scaled else 1.0, fast_bf16_matmul)

    # Grid (batch, q-tile). K/V index maps depend only on b, so they stay VMEM-resident
    # across the inner q-tile iterations.
    in_specs = [
        pl.BlockSpec((pl.Squeezed(), TQ, D_p), lambda b, q: (b, q, 0)),   # Q tile
        pl.BlockSpec((pl.Squeezed(), Lk, D_p), lambda b, q: (b, 0, 0)),   # K (resident)
        pl.BlockSpec((pl.Squeezed(), Lk, D_p), lambda b, q: (b, 0, 0)),   # V (resident)
    ]
    inputs = [Q, K, V]
    if use_mask:
        m_i8 = attn_mask.astype(jnp.int8)               # int8: 4x less DMA than int32
        if Lq_p != Lq:
            m_i8 = jnp.pad(m_i8, ((0, 0), (0, Lq_p - Lq), (0, 0)))
        in_specs.append(pl.BlockSpec((pl.Squeezed(), TQ, Lk), lambda b, q: (b, q, 0)))
        inputs.append(m_i8)

    out_specs = [
        pl.BlockSpec((pl.Squeezed(), TQ, D_p), lambda b, q: (b, q, 0)),
        pl.BlockSpec((pl.Squeezed(), TQ, Lk), lambda b, q: (b, q, 0)),
    ]
    out_shape = [
        jax.ShapeDtypeStruct((B, Lq_p, D_p), ctx_dtype),
        jax.ShapeDtypeStruct((B, Lq_p, Lk), attn_dtype),
    ]

    cost = pl.CostEstimate(
        flops=int(4 * B * Lq * Lk * D),                # QK^T + PV
        transcendentals=int(B * Lq * Lk),              # exp
        bytes_accessed=int(B * (Lq * D * q_b + Lk * D * (k_b + v_b)
                                + Lq * Lk * (mask_b + attn_b) + Lq * D * ctx_b)),
    )

    fn = pl.pallas_call(
        kernel,
        grid=(B, n_q),
        in_specs=in_specs,
        out_specs=out_specs,
        out_shape=out_shape,
        compiler_params=pltpu.CompilerParams(
            # batch axis "parallel" (megacore shards over batch, preserving per-core K/V
            # residency on v7x); q axis "arbitrary" (revisits the same K/V block).
            dimension_semantics=("parallel", "arbitrary"),
            vmem_limit_bytes=min(int(vmem_cap * 0.85), 100 * 1024 * 1024),
        ),
        cost_estimate=cost,
    )
    context, attention = fn(*inputs)
    # Slice off Lq / D padding.
    context = context[:, :Lq, :D]
    attention = attention[:, :Lq, :]
    return context, attention


def _reference(Q, K, V, scaled=None, attn_mask=None):
    """Plain-JAX reference mirroring the PyTorch forward (HIGHEST matmul precision)."""
    hp = jax.lax.Precision.HIGHEST
    attention = jnp.einsum("bqd,bkd->bqk", Q, K, precision=hp)
    if scaled:
        attention = jnp.floor_divide(attention, jnp.asarray(scaled, attention.dtype))
    if attn_mask is not None:
        attention = jnp.where(attn_mask, -jnp.inf, attention)
    attention = jax.nn.softmax(attention, axis=2)
    context = jnp.einsum("bqk,bkd->bqd", attention, V, precision=hp)
    return context, attention


if __name__ == "__main__":
    key = jax.random.PRNGKey(0)

    def quant(x, step=0.25, lim=3.75):
        # Multiples of 0.25 with |x| <= 3.75 are exact in bf16 and f32, so Q@K^T is
        # bit-identical on every matmul precision path; this keeps the floor-division
        # (`//`) check free of boundary-rounding flips between kernel and reference.
        return jnp.clip(jnp.round(x / step) * step, -lim, lim)

    TOL = dict(atol=2e-2, rtol=2e-2)

    # Case 1: multi-q-tile path with Lq padding (no scale, no mask).
    B, Lq, Lk, D = 2, 320, 128, 128
    k1, k2, k3, k4 = jax.random.split(key, 4)
    Q = quant(jax.random.normal(k1, (B, Lq, D), dtype=jnp.float32))
    K = quant(jax.random.normal(k2, (B, Lk, D), dtype=jnp.float32))
    V = quant(jax.random.normal(k3, (B, Lk, D), dtype=jnp.float32))

    ctx, attn = scaled_dot_product_attention(Q, K, V)
    jax.block_until_ready((ctx, attn))
    ctx_r, attn_r = _reference(Q, K, V)
    assert ctx.shape == (B, Lq, D) and attn.shape == (B, Lq, Lk)
    assert jnp.allclose(attn, attn_r, **TOL)
    assert jnp.allclose(ctx, ctx_r, **TOL)

    # Case 2: small shapes (D < 128 padded in-wrapper), torch `//` scaling + attn_mask.
    B2, Lq2, Lk2, D2 = 2, 8, 8, 32
    k5, k6, k7, k8 = jax.random.split(k4, 4)
    Q2 = quant(jax.random.normal(k5, (B2, Lq2, D2), dtype=jnp.float32))
    K2 = quant(jax.random.normal(k6, (B2, Lk2, D2), dtype=jnp.float32))
    V2 = quant(jax.random.normal(k7, (B2, Lk2, D2), dtype=jnp.float32))
    mask = jax.random.bernoulli(k8, 0.3, (B2, Lq2, Lk2))
    mask = mask.at[:, :, 0].set(False)  # avoid fully-masked rows (torch yields NaN there)

    ctx2, attn2 = scaled_dot_product_attention(Q2, K2, V2, scaled=8.0, attn_mask=mask)
    jax.block_until_ready((ctx2, attn2))
    ctx2_r, attn2_r = _reference(Q2, K2, V2, scaled=8.0, attn_mask=mask)
    assert jnp.allclose(attn2, attn2_r, **TOL)
    assert jnp.allclose(ctx2, ctx2_r, **TOL)

    # Case 3: fast bf16-operand MXU path (inputs here are bf16-exact, so only the
    # probability cast differs); checked against the same reference.
    ctx3, attn3 = scaled_dot_product_attention(Q, K, V, fast_bf16_matmul=True)
    jax.block_until_ready((ctx3, attn3))
    assert jnp.allclose(attn3, attn_r, **TOL)
    assert jnp.allclose(ctx3, ctx_r, **TOL)

    print("KERNEL_OK")
</pallas_src>

<mosaic_0001>
module attributes {stable_mosaic.version = 11 : i64} {
  func.func @kernel(%arg0: i32, %arg1: i32, %arg2: memref<1x256x128xf32, #tpu.memory_space<vmem>>, %arg3: memref<1x128x128xf32, #tpu.memory_space<vmem>>, %arg4: memref<1x128x128xf32, #tpu.memory_space<vmem>>, %arg5: memref<1x256x128xf32, #tpu.memory_space<vmem>>, %arg6: memref<1x256x128xf32, #tpu.memory_space<vmem>>) attributes {dimension_semantics = [#tpu.dimension_semantics<parallel>, #tpu.dimension_semantics<arbitrary>], iteration_bounds = array<i64: 2, 2>, scalar_prefetch = 0 : i64, scratch_operands = 0 : i64, tpu.core_type = #tpu.core_type<tc>, window_params = [{transform_indices = @transform_0, window_bounds = array<i64: 1, 256, 128>}, {transform_indices = @transform_1, window_bounds = array<i64: 1, 128, 128>}, {transform_indices = @transform_2, window_bounds = array<i64: 1, 128, 128>}, {transform_indices = @transform_3, window_bounds = array<i64: 1, 256, 128>}, {transform_indices = @transform_4, window_bounds = array<i64: 1, 256, 128>}]} {
    %c0 = arith.constant 0 : index
    %c0_0 = arith.constant 0 : index
    %c0_1 = arith.constant 0 : index
    %0 = vector.load %arg2[%c0, %c0_0, %c0_1] : memref<1x256x128xf32, #tpu.memory_space<vmem>>, vector<1x256x128xf32>
    %1 = vector.shape_cast %0 : vector<1x256x128xf32> to vector<256x128xf32>
    %c0_2 = arith.constant 0 : index
    %c0_3 = arith.constant 0 : index
    %c0_4 = arith.constant 0 : index
    %2 = vector.load %arg3[%c0_2, %c0_3, %c0_4] : memref<1x128x128xf32, #tpu.memory_space<vmem>>, vector<1x128x128xf32>
    %3 = vector.shape_cast %2 : vector<1x128x128xf32> to vector<128x128xf32>
    %c0_5 = arith.constant 0 : index
    %c0_6 = arith.constant 0 : index
    %c0_7 = arith.constant 0 : index
    %4 = vector.load %arg4[%c0_5, %c0_6, %c0_7] : memref<1x128x128xf32, #tpu.memory_space<vmem>>, vector<1x128x128xf32>
    %5 = vector.shape_cast %4 : vector<1x128x128xf32> to vector<128x128xf32>
    %cst = arith.constant dense<0.000000e+00> : vector<256x128xf32>
    %6 = tpu.matmul %1, %3, %cst {dimension_numbers = #tpu.dot_dimension_numbers<[1], [1], [0], [0], [0, 0, 1, 0], [], []>} : vector<256x128xf32>, vector<128x128xf32>, vector<256x128xf32> -> vector<256x128xf32>
    %cst_8 = arith.constant dense<0xFF800000> : vector<256xf32>
    %7 = vector.multi_reduction <maximumf>, %6, %cst_8 [1] : vector<256x128xf32> to vector<256xf32>
    %8 = vector.shape_cast %7 : vector<256xf32> to vector<256x1xf32>
    %9 = vector.broadcast %8 : vector<256x1xf32> to vector<256x128xf32>
    %10 = arith.subf %6, %9 : vector<256x128xf32>
    %11 = math.exp %10 : vector<256x128xf32>
    %cst_9 = arith.constant dense<0.000000e+00> : vector<256xf32>
    %12 = vector.multi_reduction <add>, %11, %cst_9 [1] : vector<256x128xf32> to vector<256xf32>
    %13 = vector.shape_cast %12 : vector<256xf32> to vector<256x1xf32>
    %cst_10 = arith.constant 1.000000e+00 : f32
    %14 = vector.broadcast %cst_10 : f32 to vector<256x1xf32>
    %15 = arith.divf %14, %13 : vector<256x1xf32>
    %16 = vector.broadcast %15 : vector<256x1xf32> to vector<256x128xf32>
    %17 = arith.mulf %11, %16 : vector<256x128xf32>
    %c0_11 = arith.constant 0 : index
    %c0_12 = arith.constant 0 : index
    %c0_13 = arith.constant 0 : index
    %18 = vector.load %arg6[%c0_11, %c0_12, %c0_13] : memref<1x256x128xf32, #tpu.memory_space<vmem>>, vector<1x256x128xf32>
    %19 = vector.shape_cast %18 : vector<1x256x128xf32> to vector<256x128xf32>
    %20 = vector.shape_cast %17 : vector<256x128xf32> to vector<1x256x128xf32>
    tpu.vector_store %arg6[%c0_11, %c0_12, %c0_13], %20 {strides = array<i32>} : memref<1x256x128xf32, #tpu.memory_space<vmem>>, vector<1x256x128xf32>,
    %cst_14 = arith.constant dense<0.000000e+00> : vector<256x128xf32>
    %21 = tpu.matmul %11, %5, %cst_14 {dimension_numbers = #tpu.dot_dimension_numbers<[1], [0], [0], [1], [0, 0, 1, 1], [], []>} : vector<256x128xf32>, vector<128x128xf32>, vector<256x128xf32> -> vector<256x128xf32>
    %22 = vector.broadcast %15 : vector<256x1xf32> to vector<256x128xf32>
    %23 = arith.mulf %21, %22 : vector<256x128xf32>
    %c0_15 = arith.constant 0 : index
    %c0_16 = arith.constant 0 : index
    %c0_17 = arith.constant 0 : index
    %24 = vector.load %arg5[%c0_15, %c0_16, %c0_17] : memref<1x256x128xf32, #tpu.memory_space<vmem>>, vector<1x256x128xf32>
    %25 = vector.shape_cast %24 : vector<1x256x128xf32> to vector<256x128xf32>
    %26 = vector.shape_cast %23 : vector<256x128xf32> to vector<1x256x128xf32>
    tpu.vector_store %arg5[%c0_15, %c0_16, %c0_17], %26 {strides = array<i32>} : memref<1x256x128xf32, #tpu.memory_space<vmem>>, vector<1x256x128xf32>,
    return
  }
  func.func @transform_0(%arg0: i32, %arg1: i32) -> (i32, i32, i32) {
    %c0_i32 = arith.constant 0 : i32
    %c0_i32_0 = arith.constant 0 : i32
    return %arg0, %arg1, %c0_i32 : i32, i32, i32
  }
  func.func @transform_1(%arg0: i32, %arg1: i32) -> (i32, i32, i32) {
    %c0_i32 = arith.constant 0 : i32
    %c0_i32_0 = arith.constant 0 : i32
    %c0_i32_1 = arith.constant 0 : i32
    return %arg0, %c0_i32, %c0_i32_0 : i32, i32, i32
  }
  func.func @transform_2(%arg0: i32, %arg1: i32) -> (i32, i32, i32) {
    %c0_i32 = arith.constant 0 : i32
    %c0_i32_0 = arith.constant 0 : i32
    %c0_i32_1 = arith.constant 0 : i32
    return %arg0, %c0_i32, %c0_i32_0 : i32, i32, i32
  }
  func.func @transform_3(%arg0: i32, %arg1: i32) -> (i32, i32, i32) {
    %c0_i32 = arith.constant 0 : i32
    %c0_i32_0 = arith.constant 0 : i32
    return %arg0, %arg1, %c0_i32 : i32, i32, i32
  }
  func.func @transform_4(%arg0: i32, %arg1: i32) -> (i32, i32, i32) {
    %c0_i32 = arith.constant 0 : i32
    %c0_i32_0 = arith.constant 0 : i32
    return %arg0, %arg1, %c0_i32 : i32, i32, i32
  }
}

</mosaic_0001>

<llo_original>
// kernel: tpu_custom_call.1
$region0: #{tpu_custom_call.1}
  #allocation0 [shape = 'u32[]', space=smem, size = 0x4, offset = 0x4, fixed_abs, tag = 'smem constant byte address 0x4 - core index']
  #allocation1 [shape = 'u32[144,128]{1,0:T(1,128)}', space=vmem, size = 0x12000, scoped, tag = 'internal scratch']
  %s0 = inlined_call_operand.hbm [shape: f32[2,512,128], index: 0, kind: input, shape index: {}]
  %s1 = inlined_call_operand.hbm [shape: f32[2,128,128], index: 1, kind: input, shape index: {}]
  %s2 = inlined_call_operand.hbm [shape: f32[2,128,128], index: 2, kind: input, shape index: {}]
  %s3 = inlined_call_operand.hbm [shape: f32[2,512,128], index: 3, kind: output, shape index: {0}]
  %s4 = inlined_call_operand.hbm [shape: f32[2,512,128], index: 4, kind: output, shape index: {1}]
  %5 = xla_tuple %s3, %s4
  %s6 = sld [smem:[#allocation0]]
  $region65: #{tpu_custom_call.1} parent=0
    _
  %s8 = ssub.s32 1, %s6
  %s9 = scalar_select 0, %s8, %s6
  $region1: #{tpu_custom_call.1} parent=0
    #allocation2 [shape = 'u8[262144]{0}', space=vmem, size = 0x40000, scoped, tag = 'input window, operand 0']
    #allocation3 [shape = 's32[2]{0}', space=sflag, size = 0x8, scoped, tag = 'scoped memory for tpu_custom_call.1']
    #allocation4 [shape = 's32[2]{0}', space=sflag, size = 0x8, scoped, tag = 'scoped memory for tpu_custom_call.1']
    #allocation5 [shape = 'u8[131072]{0}', space=vmem, size = 0x20000, scoped, tag = 'input window, operand 1']
    #allocation6 [shape = 's32[2]{0}', space=sflag, size = 0x8, scoped, tag = 'scoped memory for tpu_custom_call.1']
    #allocation7 [shape = 'u8[131072]{0}', space=vmem, size = 0x20000, scoped, tag = 'input window, operand 2']
    #allocation8 [shape = 'u8[262144]{0}', space=vmem, size = 0x40000, scoped, tag = 'output window, operand 0']
    #allocation9 [shape = 'u8[262144]{0}', space=vmem, size = 0x40000, scoped, tag = 'output window, operand 1']
    #allocation10 [shape = 's32[2]{0}', space=sflag, size = 0x8, scoped, tag = 'scoped memory for tpu_custom_call.1']
    %10 = vsyncpa [#allocation3], 0
    %s11 = scalar_lea.sflag [#allocation3], 1
    %12 = vsyncpa %s11, 0
    %13 = vsyncpa [#allocation6], 0
    %s14 = scalar_lea.sflag [#allocation6], 1
    %15 = vsyncpa %s14, 0
    %16 = vsyncpa [#allocation4], 0
    %s17 = scalar_lea.sflag [#allocation4], 1
    %18 = vsyncpa %s17, 0
    %19 = vsyncpa [#allocation10], 0
    %s20 = scalar_lea.sflag [#allocation10], 1
    %21 = vsyncpa %s20, 0
    loop: start=0, step=1, limit=6
    $region2: #{tpu_custom_call.1} parent=1 // loop_pre_header
      _
    $region3: #{tpu_custom_call.1} parent=1 // loop_header
      %s23 = sphi 0, %s27
      %p24 = scmp.ge.s32.totalorder %s23, 6
      %s30 = sphi 0, %s42
      %s31 = sphi 0, %s38
      %s32 = sphi 0, %s30
      %s33 = sphi 0, %s31
      %s34 = sphi 0, %s32
      %s35 = sphi 0, %s33
      %s47 = sphi 0, %s49
      %s50 = sphi 0, %s47
      %s51 = sphi 0, %s50
      %s67 = sphi 0, %s51
      %s73 = sphi 0, %s75
      %s76 = sphi 0, %s73
      %s77 = sphi 0, %s76
      %s93 = sphi 0, %s77
      %s99 = sphi 0, %s101
      %s102 = sphi 0, %s99
      %s103 = sphi 0, %s102
      %s119 = sphi 0, %s103
      %s127 = sphi 0, %s129
      %s130 = sphi 0, %s127
      %s131 = sphi 0, %s130
      %s147 = sphi 0, %s131
      %s155 = sphi 0, %s157
      %s158 = sphi 0, %s155
      %s159 = sphi 0, %s158
      %s175 = sphi 0, %s159
    $region4: #{tpu_custom_call.1} parent=1 // loop_header_branch
      %26 = sbr.rel (%p24) target = $region8
    $region5: #{tpu_custom_call.1} parent=1 // loop_body
      %s28 = ssub.s32 %s23, 1
      %s29 = ssub.s32 %s23, 2
      %s36 = sadd.s32 1, %s31
      %p37 = scmp.ge.s32.totalorder %s36, 2
      %s38 = scalar_select %p37, 0, %s36
      %s39 = sadd.s32 1, %s30
      %s40 = scalar_select %p37, %s39, %s30
      %p41 = scmp.ge.s32.totalorder %s40, 2
      %s42 = scalar_select %p41, 0, %s40
      %s43 = ssub.s32 %s30, %s42
      %s44 = ssub.s32 %s31, %s38
      %s45 = sor.u32 %s43, %s44
      %p46 = scmp.eq.s32.totalorder %s45, 0
      %s48 = sadd.s32 %s47, 1
      %s49 = scalar_select %p46, %s47, %s48
      %p52 = pneg %p46
      %p53 = scmp.eq.s32.totalorder %s23, 3
      %p54 = por %p52, %p53
      %p55 = scmp.ne.s32.totalorder %s47, %s50
      %p56 = scmp.eq.s32.totalorder %s23, 0
      %p57 = por %p55, %p56
      %p58 = scmp.ne.s32.totalorder %s47, %s50
      %p59 = scmp.eq.s32.totalorder %s28, 3
      %p60 = por %p58, %p59
      %p61 = scmp.ne.s32.totalorder %s50, %s51
      %p62 = scmp.eq.s32.totalorder %s28, 0
      %p63 = por %p61, %p62
      %p64 = scmp.ne.s32.totalorder %s50, %s51
      %p65 = scmp.eq.s32.totalorder %s29, 3
      %p66 = por %p64, %p65
      %p68 = scmp.ne.s32.totalorder %s51, %s67
      %p69 = scmp.eq.s32.totalorder %s29, 0
      %p70 = por %p68, %p69
      %s71 = ssub.s32 %s30, %s42
      %p72 = scmp.eq.s32.totalorder %s71, 0
      %s74 = sadd.s32 %s73, 1
      %s75 = scalar_select %p72, %s73, %s74
      %p78 = pneg %p72
      %p79 = scmp.eq.s32.totalorder %s23, 3
      %p80 = por %p78, %p79
      %p81 = scmp.ne.s32.totalorder %s73, %s76
      %p82 = scmp.eq.s32.totalorder %s23, 0
      %p83 = por %p81, %p82
      %p84 = scmp.ne.s32.totalorder %s73, %s76
      %p85 = scmp.eq.s32.totalorder %s28, 3
      %p86 = por %p84, %p85
      %p87 = scmp.ne.s32.totalorder %s76, %s77
      %p88 = scmp.eq.s32.totalorder %s28, 0
      %p89 = por %p87, %p88
      %p90 = scmp.ne.s32.totalorder %s76, %s77
      %p91 = scmp.eq.s32.totalorder %s29, 3
      %p92 = por %p90, %p91
      %p94 = scmp.ne.s32.totalorder %s77, %s93
      %p95 = scmp.eq.s32.totalorder %s29, 0
      %p96 = por %p94, %p95
      %s97 = ssub.s32 %s30, %s42
      %p98 = scmp.eq.s32.totalorder %s97, 0
      %s100 = sadd.s32 %s99, 1
      %s101 = scalar_select %p98, %s99, %s100
      %p104 = pneg %p98
      %p105 = scmp.eq.s32.totalorder %s23, 3
      %p106 = por %p104, %p105
      %p107 = scmp.ne.s32.totalorder %s99, %s102
      %p108 = scmp.eq.s32.totalorder %s23, 0
      %p109 = por %p107, %p108
      %p110 = scmp.ne.s32.totalorder %s99, %s102
      %p111 = scmp.eq.s32.totalorder %s28, 3
      %p112 = por %p110, %p111
      %p113 = scmp.ne.s32.totalorder %s102, %s103
      %p114 = scmp.eq.s32.totalorder %s28, 0
      %p115 = por %p113, %p114
      %p116 = scmp.ne.s32.totalorder %s102, %s103
      %p117 = scmp.eq.s32.totalorder %s29, 3
      %p118 = por %p116, %p117
      %p120 = scmp.ne.s32.totalorder %s103, %s119
      %p121 = scmp.eq.s32.totalorder %s29, 0
      %p122 = por %p120, %p121
      %s123 = ssub.s32 %s30, %s42
      %s124 = ssub.s32 %s31, %s38
      %s125 = sor.u32 %s123, %s124
      %p126 = scmp.eq.s32.totalorder %s125, 0
      %s128 = sadd.s32 %s127, 1
      %s129 = scalar_select %p126, %s127, %s128
      %p132 = pneg %p126
      %p133 = scmp.eq.s32.totalorder %s23, 3
      %p134 = por %p132, %p133
      %p135 = scmp.ne.s32.totalorder %s127, %s130
      %p136 = scmp.eq.s32.totalorder %s23, 0
      %p137 = por %p135, %p136
      %p138 = scmp.ne.s32.totalorder %s127, %s130
      %p139 = scmp.eq.s32.totalorder %s28, 3
      %p140 = por %p138, %p139
      %p141 = scmp.ne.s32.totalorder %s130, %s131
      %p142 = scmp.eq.s32.totalorder %s28, 0
      %p143 = por %p141, %p142
      %p144 = scmp.ne.s32.totalorder %s130, %s131
      %p145 = scmp.eq.s32.totalorder %s29, 3
      %p146 = por %p144, %p145
      %p148 = scmp.ne.s32.totalorder %s131, %s147
      %p149 = scmp.eq.s32.totalorder %s29, 0
      %p150 = por %p148, %p149
      %s151 = ssub.s32 %s30, %s42
      %s152 = ssub.s32 %s31, %s38
      %s153 = sor.u32 %s151, %s152
      %p154 = scmp.eq.s32.totalorder %s153, 0
      %s156 = sadd.s32 %s155, 1
      %s157 = scalar_select %p154, %s155, %s156
      %p160 = pneg %p154
      %p161 = scmp.eq.s32.totalorder %s23, 3
      %p162 = por %p160, %p161
      %p163 = scmp.ne.s32.totalorder %s155, %s158
      %p164 = scmp.eq.s32.totalorder %s23, 0
      %p165 = por %p163, %p164
      %p166 = scmp.ne.s32.totalorder %s155, %s158
      %p167 = scmp.eq.s32.totalorder %s28, 3
      %p168 = por %p166, %p167
      %p169 = scmp.ne.s32.totalorder %s158, %s159
      %p170 = scmp.eq.s32.totalorder %s28, 0
      %p171 = por %p169, %p170
      %p172 = scmp.ne.s32.totalorder %s158, %s159
      %p173 = scmp.eq.s32.totalorder %s29, 3
      %p174 = por %p172, %p173
      %p176 = scmp.ne.s32.totalorder %s159, %s175
      %p177 = scmp.eq.s32.totalorder %s29, 0
      %p178 = por %p176, %p177
      %p179 = scmp.le.s32.totalorder 1, %s23
      %p180 = scmp.lt.s32.totalorder %s23, 5
      %p181 = pnand %p179, %p180
      %p182 = pneg %p181
      // Predicated region
      $region9: #{tpu_custom_call.1} parent=5 // pred_check
        _
      $region10: #{tpu_custom_call.1} parent=5 // pred_check_branch
        %184 = sbr.rel (%p181) target = $region12
      $region11: #{tpu_custom_call.1} parent=5 // pred_region
        %s185 = ssub.s32 %s23, 1
      $region12: #{tpu_custom_call.1} parent=5 // pred_fallthru
        _
      %p186 = scmp.lt.s32.totalorder %s23, 4
      // Predicated region
      $region13: #{tpu_custom_call.1} parent=5 // pred_check
        %p187 = pneg %p186
      $region14: #{tpu_custom_call.1} parent=5 // pred_check_branch
        %189 = sbr.rel (%p187) target = $region16
      $region15: #{tpu_custom_call.1} parent=5 // pred_region
        // Predicated region
        $region17: #{tpu_custom_call.1} parent=15 // pred_check
          %p190 = pneg %p57
        $region18: #{tpu_custom_call.1} parent=15 // pred_check_branch
          %192 = sbr.rel (%p190) target = $region20
        $region19: #{tpu_custom_call.1} parent=15 // pred_region
          %s193 = sand.u32 %s47, 1
          %s194 = scalar_lea.sflag [#allocation3], %s193
          %s195 = sand.u32 %s47, 1
          %s196 = smul.addr %s195, 256
          %s197 = scalar_lea.vmem [#allocation2], %s196
          %s198 = smul.u32 32, %s31
          %s200 = ssub.s32 4096, 4096
          %201 = vsyncadd %s194, %s200
          %s202 = smul.addr %s30, 64
          %s203 = sadd.s32 %s198, %s202
          %s204 = smul.addr %s203, 128
          %s205 = scalar_lea.hbm %s0, %s204
          %s206 = sshll.u32 %s197, 4
          %s207 = int_to_ptr.vmem [resolvable:$true] %s206
          %212 = dma.hbm_to_vmem [thread:$0]  %s205, 4096, %s207, %s194, 128, 128, 8
        $region20: #{tpu_custom_call.1} parent=15 // pred_fallthru
          _
        // Predicated region
        $region21: #{tpu_custom_call.1} parent=15 // pred_check
          %p213 = pneg %p83
        $region22: #{tpu_custom_call.1} parent=15 // pred_check_branch
          %215 = sbr.rel (%p213) target = $region24
        $region23: #{tpu_custom_call.1} parent=15 // pred_region
          %s216 = sand.u32 %s23, 1
          %s217 = scalar_lea.sflag [#allocation6], %s216
          %s218 = sand.u32 %s73, 1
          %s219 = smul.addr %s218, 128
          %s220 = scalar_lea.vmem [#allocation5], %s219
          %s222 = ssub.s32 2048, 2048
          %223 = vsyncadd %s217, %s222
          %s224 = smul.addr %s30, 16
          %s225 = smul.addr %s224, 128
          %s226 = scalar_lea.hbm %s1, %s225
          %s227 = sshll.u32 %s220, 4
          %s228 = int_to_ptr.vmem [resolvable:$true] %s227
          %233 = dma.hbm_to_vmem [thread:$0]  %s226, 2048, %s228, %s217, 128, 128, 8
        $region24: #{tpu_custom_call.1} parent=15 // pred_fallthru
          _
        // Predicated region
        $region25: #{tpu_custom_call.1} parent=15 // pred_check
          %p234 = pneg %p109
        $region26: #{tpu_custom_call.1} parent=15 // pred_check_branch
          %236 = sbr.rel (%p234) target = $region28
        $region27: #{tpu_custom_call.1} parent=15 // pred_region
          %s237 = sand.u32 %s23, 1
          %s238 = scalar_lea.sflag [#allocation6], %s237
          %s239 = sand.u32 %s99, 1
          %s240 = smul.addr %s239, 128
          %s241 = scalar_lea.vmem [#allocation7], %s240
          %s243 = ssub.s32 2048, 2048
          %244 = vsyncadd %s238, %s243
          %s245 = smul.addr %s30, 16
          %s246 = smul.addr %s245, 128
          %s247 = scalar_lea.hbm %s2, %s246
          %s248 = sshll.u32 %s241, 4
          %s249 = int_to_ptr.vmem [resolvable:$true] %s248
          %254 = dma.hbm_to_vmem [thread:$0]  %s247, 2048, %s249, %s238, 128, 128, 8
        $region28: #{tpu_custom_call.1} parent=15 // pred_fallthru
          _
      $region16: #{tpu_custom_call.1} parent=5 // pred_fallthru
        _
      %p255 = scmp.le.s32.totalorder 1, %s23
      %p256 = scmp.lt.s32.totalorder %s23, 5
      %p257 = pnand %p255, %p256
      %p258 = pneg %p257
      // Predicated region
      $region29: #{tpu_custom_call.1} parent=5 // pred_check
        _
      $region30: #{tpu_custom_call.1} parent=5 // pred_check_branch
        %260 = sbr.rel (%p257) target = $region32
      $region31: #{tpu_custom_call.1} parent=5 // pred_region
        %s261 = ssub.s32 %s23, 1
        %s262 = sand.u32 %s50, 1
        %s263 = scalar_lea.sflag [#allocation3], %s262
        %s264 = sand.u32 %s50, 1
        %s265 = smul.addr %s264, 256
        %s266 = scalar_lea.vmem [#allocation2], %s265
        // Predicated region
        $region33: #{tpu_custom_call.1} parent=31 // pred_check
          %p267 = pneg %p63
        $region34: #{tpu_custom_call.1} parent=31 // pred_check_branch
          %269 = sbr.rel (%p267) target = $region36
        $region35: #{tpu_custom_call.1} parent=31 // pred_region
          %270 = dma.done %s263, 4096
        $region36: #{tpu_custom_call.1} parent=31 // pred_fallthru
          _
        %s271 = sand.u32 %s28, 1
        %s272 = scalar_lea.sflag [#allocation6], %s271
        %s273 = sand.u32 %s76, 1
        %s274 = smul.addr %s273, 128
        %s275 = scalar_lea.vmem [#allocation5], %s274
        // Predicated region
        $region37: #{tpu_custom_call.1} parent=31 // pred_check
          %p276 = pneg %p89
        $region38: #{tpu_custom_call.1} parent=31 // pred_check_branch
          %278 = sbr.rel (%p276) target = $region40
        $region39: #{tpu_custom_call.1} parent=31 // pred_region
          %279 = dma.done %s272, 2048
        $region40: #{tpu_custom_call.1} parent=31 // pred_fallthru
          _
        %s280 = sand.u32 %s28, 1
        %s281 = scalar_lea.sflag [#allocation6], %s280
        %s282 = sand.u32 %s102, 1
        %s283 = smul.addr %s282, 128
        %s284 = scalar_lea.vmem [#allocation7], %s283
        // Predicated region
        $region41: #{tpu_custom_call.1} parent=31 // pred_check
          %p285 = pneg %p115
        $region42: #{tpu_custom_call.1} parent=31 // pred_check_branch
          %287 = sbr.rel (%p285) target = $region44
        $region43: #{tpu_custom_call.1} parent=31 // pred_region
          %288 = dma.done %s281, 2048
        $region44: #{tpu_custom_call.1} parent=31 // pred_fallthru
          _
        %s289 = sand.u32 %s50, 1
        %s290 = scalar_lea.sflag [#allocation3], %s289
        %s291 = sand.u32 %s50, 1
        %s292 = smul.addr %s291, 256
        %s293 = scalar_lea.vmem [#allocation2], %s292
        %p294 = pneg %p63
        %p295 = pneg %p60
        %s296 = sand.u32 %s28, 1
        %s297 = scalar_lea.sflag [#allocation6], %s296
        %s298 = sand.u32 %s76, 1
        %s299 = smul.addr %s298, 128
        %s300 = scalar_lea.vmem [#allocation5], %s299
        %p301 = pneg %p89
        %p302 = pneg %p86
        %s303 = sand.u32 %s28, 1
        %s304 = scalar_lea.sflag [#allocation6], %s303
        %s305 = sand.u32 %s102, 1
        %s306 = smul.addr %s305, 128
        %s307 = scalar_lea.vmem [#allocation7], %s306
        %p308 = pneg %p115
        %p309 = pneg %p112
        %p310 = pneg %p143
        %p311 = pneg %p140
        %s312 = sand.u32 %s130, 1
        %s313 = scalar_lea.sflag [#allocation4], %s312
        %s314 = sand.u32 %s130, 1
        %s315 = smul.addr %s314, 256
        %s316 = scalar_lea.vmem [#allocation8], %s315
        %p317 = pneg %p171
        %p318 = pneg %p168
        %s319 = sand.u32 %s158, 1
        %s320 = scalar_lea.sflag [#allocation10], %s319
        %s321 = sand.u32 %s158, 1
        %s322 = smul.addr %s321, 256
        %s323 = scalar_lea.vmem [#allocation9], %s322
        %s324 = smul.u32 32, %s33
        %s325 = smul.u32 32, %s33
        %s326 = smul.u32 32, %s33
        %v327 = vld [vmem:[%s266] sm:$0xff]
        %v328 = vld [vmem:[%s266 + $0x8] sm:$0xff]
        %v329 = vld [vmem:[%s266 + $0x10] sm:$0xff]
        %v330 = vld [vmem:[%s266 + $0x18] sm:$0xff]
        %v331 = vld [vmem:[%s266 + $0x20] sm:$0xff]
        %v332 = vld [vmem:[%s266 + $0x28] sm:$0xff]
        %v333 = vld [vmem:[%s266 + $0x30] sm:$0xff]
        %v334 = vld [vmem:[%s266 + $0x38] sm:$0xff]
        %v335 = vld [vmem:[%s266 + $0x40] sm:$0xff]
        %v336 = vld [vmem:[%s266 + $0x48] sm:$0xff]
        %v337 = vld [vmem:[%s266 + $0x50] sm:$0xff]
        %v338 = vld [vmem:[%s266 + $0x58] sm:$0xff]
        %v339 = vld [vmem:[%s266 + $0x60] sm:$0xff]
        %v340 = vld [vmem:[%s266 + $0x68] sm:$0xff]
        %v341 = vld [vmem:[%s266 + $0x70] sm:$0xff]
        %v342 = vld [vmem:[%s266 + $0x78] sm:$0xff]
        %v343 = vld [vmem:[%s266 + $0x80] sm:$0xff]
        %v344 = vld [vmem:[%s266 + $0x88] sm:$0xff]
        %v345 = vld [vmem:[%s266 + $0x90] sm:$0xff]
        %v346 = vld [vmem:[%s266 + $0x98] sm:$0xff]
        %v347 = vld [vmem:[%s266 + $0xa0] sm:$0xff]
        %v348 = vld [vmem:[%s266 + $0xa8] sm:$0xff]
        %v349 = vld [vmem:[%s266 + $0xb0] sm:$0xff]
        %v350 = vld [vmem:[%s266 + $0xb8] sm:$0xff]
        %v351 = vld [vmem:[%s266 + $0xc0] sm:$0xff]
        %v352 = vld [vmem:[%s266 + $0xc8] sm:$0xff]
        %v353 = vld [vmem:[%s266 + $0xd0] sm:$0xff]
        %v354 = vld [vmem:[%s266 + $0xd8] sm:$0xff]
        %v355 = vld [vmem:[%s266 + $0xe0] sm:$0xff]
        %v356 = vld [vmem:[%s266 + $0xe8] sm:$0xff]
        %v357 = vld [vmem:[%s266 + $0xf0] sm:$0xff]
        %v358 = vld [vmem:[%s266 + $0xf8] sm:$0xff]
        %v359 = vld [vmem:[%s275] sm:$0xff]
        %v360 = vld [vmem:[%s275 + $0x8] sm:$0xff]
        %v361 = vld [vmem:[%s275 + $0x10] sm:$0xff]
        %v362 = vld [vmem:[%s275 + $0x18] sm:$0xff]
        %v363 = vld [vmem:[%s275 + $0x20] sm:$0xff]
        %v364 = vld [vmem:[%s275 + $0x28] sm:$0xff]
        %v365 = vld [vmem:[%s275 + $0x30] sm:$0xff]
        %v366 = vld [vmem:[%s275 + $0x38] sm:$0xff]
        %v367 = vld [vmem:[%s275 + $0x40] sm:$0xff]
        %v368 = vld [vmem:[%s275 + $0x48] sm:$0xff]
        %v369 = vld [vmem:[%s275 + $0x50] sm:$0xff]
        %v370 = vld [vmem:[%s275 + $0x58] sm:$0xff]
        %v371 = vld [vmem:[%s275 + $0x60] sm:$0xff]
        %v372 = vld [vmem:[%s275 + $0x68] sm:$0xff]
        %v373 = vld [vmem:[%s275 + $0x70] sm:$0xff]
        %v374 = vld [vmem:[%s275 + $0x78] sm:$0xff]
        %v375 = vld [vmem:[%s284] sm:$0xff]
        %v376 = vld [vmem:[%s284 + $0x8] sm:$0xff]
        %v377 = vld [vmem:[%s284 + $0x10] sm:$0xff]
        %v378 = vld [vmem:[%s284 + $0x18] sm:$0xff]
        %v379 = vld [vmem:[%s284 + $0x20] sm:$0xff]
        %v380 = vld [vmem:[%s284 + $0x28] sm:$0xff]
        %v381 = vld [vmem:[%s284 + $0x30] sm:$0xff]
        %v382 = vld [vmem:[%s284 + $0x38] sm:$0xff]
        %v383 = vld [vmem:[%s284 + $0x40] sm:$0xff]
        %v384 = vld [vmem:[%s284 + $0x48] sm:$0xff]
        %v385 = vld [vmem:[%s284 + $0x50] sm:$0xff]
        %v386 = vld [vmem:[%s284 + $0x58] sm:$0xff]
        %v387 = vld [vmem:[%s284 + $0x60] sm:$0xff]
        %v388 = vld [vmem:[%s284 + $0x68] sm:$0xff]
        %v389 = vld [vmem:[%s284 + $0x70] sm:$0xff]
        %v390 = vld [vmem:[%s284 + $0x78] sm:$0xff]
        %391 = vmatprep.subr.mxu0 0.0
        %392 = vmatpush1.xpose.msra.mxu0 %v359
        %393 = vmatprep.subr.mxu0 0.0
        %394 = vmatpush1.xpose.msra.mxu0 %v360
        %395 = vmatprep.subr.mxu0 0.0
        %396 = vmatpush1.xpose.msra.mxu0 %v361
        %397 = vmatprep.subr.mxu0 0.0
        %398 = vmatpush1.xpose.msra.mxu0 %v362
        %399 = vmatprep.subr.mxu0 0.0
        %400 = vmatpush1.xpose.msra.mxu0 %v363
        %401 = vmatprep.subr.mxu0 0.0
        %402 = vmatpush1.xpose.msra.mxu0 %v364
        %403 = vmatprep.subr.mxu0 0.0
        %404 = vmatpush1.xpose.msra.mxu0 %v365
        %405 = vmatprep.subr.mxu0 0.0
        %406 = vmatpush1.xpose.msra.mxu0 %v366
        %407 = vmatprep.subr.mxu0 0.0
        %408 = vmatpush1.xpose.msra.mxu0 %v367
        %409 = vmatprep.subr.mxu0 0.0
        %410 = vmatpush1.xpose.msra.mxu0 %v368
        %411 = vmatprep.subr.mxu0 0.0
        %412 = vmatpush1.xpose.msra.mxu0 %v369
        %413 = vmatprep.subr.mxu0 0.0
        %414 = vmatpush1.xpose.msra.mxu0 %v370
        %415 = vmatprep.subr.mxu0 0.0
        %416 = vmatpush1.xpose.msra.mxu0 %v371
        %417 = vmatprep.subr.mxu0 0.0
        %418 = vmatpush1.xpose.msra.mxu0 %v372
        %419 = vmatprep.subr.mxu0 0.0
        %420 = vmatpush1.xpose.msra.mxu0 %v373
        %421 = vmatprep.subr.mxu0 0.0
        %422 = vmatpush1.xpose.msra.mxu0 %v374
        %423 = vmatprep.subr.mxu0 0.0
        %424 = vmatpush1.xpose.msra.mxu0 0.0
        %425 = vmatprep.subr.mxu0 0.0
        %426 = vmatpush1.xpose.msra.mxu0 0.0
        %427 = vmatprep.subr.mxu0 0.0
        %428 = vmatpush1.xpose.msra.mxu0 0.0
        %429 = vmatprep.subr.mxu0 0.0
        %430 = vmatpush1.xpose.msra.mxu0 0.0
        %431 = vmatprep.subr.mxu0 0.0
        %432 = vmatpush1.xpose.msra.mxu0 0.0
        %433 = vmatprep.subr.mxu0 0.0
        %434 = vmatpush1.xpose.msra.mxu0 0.0
        %435 = vmatprep.subr.mxu0 0.0
        %436 = vmatpush1.xpose.msra.mxu0 0.0
        %437 = vmatprep.subr.mxu0 0.0
        %438 = vmatpush1.xpose.msra.mxu0 0.0
        %439 = vmatprep.subr.mxu0 0.0
        %440 = vmatpush1.xpose.msra.mxu0 0.0
        %441 = vmatprep.subr.mxu0 0.0
        %442 = vmatpush1.xpose.msra.mxu0 0.0
        %443 = vmatprep.subr.mxu0 0.0
        %444 = vmatpush1.xpose.msra.mxu0 0.0
        %445 = vmatprep.subr.mxu0 0.0
        %446 = vmatpush1.xpose.msra.mxu0 0.0
        %447 = vmatprep.subr.mxu0 0.0
        %448 = vmatpush1.xpose.msra.mxu0 0.0
        %449 = vmatprep.subr.mxu0 0.0
        %450 = vmatpush1.xpose.msra.mxu0 0.0
        %451 = vmatprep.subr.mxu0 0.0
        %452 = vmatpush1.xpose.msra.mxu0 0.0
        %453 = vmatprep.subr.mxu0 0.0
        %454 = vmatpush1.xpose.msra.mxu0 0.0
        %455 = vmatprep.mubr.f32.mxu0 0.0
        %456 = vmatmul.mubr.f32.gmra.mrb[0].mxu0 %v327
        %v457 = vpop.f32.mrb[0].mxu0
        %v458 = vadd.f32 0.0, %v457
        %v459 = vpop.f32.mrb[0].mxu0
        %460 = vmatprep.mubr.f32.mxu0 0.0
        %461 = vmatmul.mubr.f32.gmra.mrb[0].mxu0 %v328
        %v462 = vpop.f32.mrb[0].mxu0
        %v463 = vadd.f32 0.0, %v462
        %v464 = vpop.f32.mrb[0].mxu0
        %465 = vmatprep.mubr.f32.mxu0 0.0
        %466 = vmatmul.mubr.f32.gmra.mrb[0].mxu0 %v329
        %v467 = vpop.f32.mrb[0].mxu0
        %v468 = vadd.f32 0.0, %v467
        %v469 = vpop.f32.mrb[0].mxu0
        %470 = vmatprep.mubr.f32.mxu0 0.0
        %471 = vmatmul.mubr.f32.gmra.mrb[0].mxu0 %v330
        %v472 = vpop.f32.mrb[0].mxu0
        %v473 = vadd.f32 0.0, %v472
        %v474 = vpop.f32.mrb[0].mxu0
        %475 = vmatprep.mubr.f32.mxu0 0.0
        %476 = vmatmul.mubr.f32.gmra.mrb[0].mxu0 %v331
        %v477 = vpop.f32.mrb[0].mxu0
        %v478 = vadd.f32 0.0, %v477
        %v479 = vpop.f32.mrb[0].mxu0
        %480 = vmatprep.mubr.f32.mxu0 0.0
        %481 = vmatmul.mubr.f32.gmra.mrb[0].mxu0 %v332
        %v482 = vpop.f32.mrb[0].mxu0
        %v483 = vadd.f32 0.0, %v482
        %v484 = vpop.f32.mrb[0].mxu0
        %485 = vmatprep.mubr.f32.mxu0 0.0
        %486 = vmatmul.mubr.f32.gmra.mrb[0].mxu0 %v333
        %v487 = vpop.f32.mrb[0].mxu0
        %v488 = vadd.f32 0.0, %v487
        %v489 = vpop.f32.mrb[0].mxu0
        %490 = vmatprep.mubr.f32.mxu0 0.0
        %491 = vmatmul.mubr.f32.gmra.mrb[0].mxu0 %v334
        %v492 = vpop.f32.mrb[0].mxu0
        %v493 = vadd.f32 0.0, %v492
        %v494 = vpop.f32.mrb[0].mxu0
        %495 = vmatprep.mubr.f32.mxu0 0.0
        %496 = vmatmul.mubr.f32.gmra.mrb[0].mxu0 %v335
        %v497 = vpop.f32.mrb[0].mxu0
        %v498 = vadd.f32 0.0, %v497
        %v499 = vpop.f32.mrb[0].mxu0
        %500 = vmatprep.mubr.f32.mxu0 0.0
        %501 = vmatmul.mubr.f32.gmra.mrb[0].mxu0 %v336
        %v502 = vpop.f32.mrb[0].mxu0
        %v503 = vadd.f32 0.0, %v502
        %v504 = vpop.f32.mrb[0].mxu0
        %505 = vmatprep.mubr.f32.mxu0 0.0
        %506 = vmatmul.mubr.f32.gmra.mrb[0].mxu0 %v337
        %v507 = vpop.f32.mrb[0].mxu0
        %v508 = vadd.f32 0.0, %v507
        %v509 = vpop.f32.mrb[0].mxu0
        %510 = vmatprep.mubr.f32.mxu0 0.0
        %511 = vmatmul.mubr.f32.gmra.mrb[0].mxu0 %v338
        %v512 = vpop.f32.mrb[0].mxu0
        %v513 = vadd.f32 0.0, %v512
        %v514 = vpop.f32.mrb[0].mxu0
        %515 = vmatprep.mubr.f32.mxu0 0.0
        %516 = vmatmul.mubr.f32.gmra.mrb[0].mxu0 %v339
        %v517 = vpop.f32.mrb[0].mxu0
        %v518 = vadd.f32 0.0, %v517
        %v519 = vpop.f32.mrb[0].mxu0
        %520 = vmatprep.mubr.f32.mxu0 0.0
        %521 = vmatmul.mubr.f32.gmra.mrb[0].mxu0 %v340
        %v522 = vpop.f32.mrb[0].mxu0
        %v523 = vadd.f32 0.0, %v522
        %v524 = vpop.f32.mrb[0].mxu0
        %525 = vmatprep.mubr.f32.mxu0 0.0
        %526 = vmatmul.mubr.f32.gmra.mrb[0].mxu0 %v341
        %v527 = vpop.f32.mrb[0].mxu0
        %v528 = vadd.f32 0.0, %v527
        %v529 = vpop.f32.mrb[0].mxu0
        %530 = vmatprep.mubr.f32.mxu0 0.0
        %531 = vmatmul.mubr.f32.gmra.mrb[0].mxu0 %v342
        %v532 = vpop.f32.mrb[0].mxu0
        %v533 = vadd.f32 0.0, %v532
        %v534 = vpop.f32.mrb[0].mxu0
        %535 = vmatprep.mubr.f32.mxu0 0.0
        %536 = vmatmul.mubr.f32.gmra.mrb[0].mxu0 %v343
        %v537 = vpop.f32.mrb[0].mxu0
        %v538 = vadd.f32 0.0, %v537
        %v539 = vpop.f32.mrb[0].mxu0
        %540 = vmatprep.mubr.f32.mxu0 0.0
        %541 = vmatmul.mubr.f32.gmra.mrb[0].mxu0 %v344
        %v542 = vpop.f32.mrb[0].mxu0
        %v543 = vadd.f32 0.0, %v542
        %v544 = vpop.f32.mrb[0].mxu0
        %545 = vmatprep.mubr.f32.mxu0 0.0
        %546 = vmatmul.mubr.f32.gmra.mrb[0].mxu0 %v345
        %v547 = vpop.f32.mrb[0].mxu0
        %v548 = vadd.f32 0.0, %v547
        %v549 = vpop.f32.mrb[0].mxu0
        %550 = vmatprep.mubr.f32.mxu0 0.0
        %551 = vmatmul.mubr.f32.gmra.mrb[0].mxu0 %v346
        %v552 = vpop.f32.mrb[0].mxu0
        %v553 = vadd.f32 0.0, %v552
        %v554 = vpop.f32.mrb[0].mxu0
        %555 = vmatprep.mubr.f32.mxu0 0.0
        %556 = vmatmul.mubr.f32.gmra.mrb[0].mxu0 %v347
        %v557 = vpop.f32.mrb[0].mxu0
        %v558 = vadd.f32 0.0, %v557
        %v559 = vpop.f32.mrb[0].mxu0
        %560 = vmatprep.mubr.f32.mxu0 0.0
        %561 = vmatmul.mubr.f32.gmra.mrb[0].mxu0 %v348
        %v562 = vpop.f32.mrb[0].mxu0
        %v563 = vadd.f32 0.0, %v562
        %v564 = vpop.f32.mrb[0].mxu0
        %565 = vmatprep.mubr.f32.mxu0 0.0
        %566 = vmatmul.mubr.f32.gmra.mrb[0].mxu0 %v349
        %v567 = vpop.f32.mrb[0].mxu0
        %v568 = vadd.f32 0.0, %v567
        %v569 = vpop.f32.mrb[0].mxu0
        %570 = vmatprep.mubr.f32.mxu0 0.0
        %571 = vmatmul.mubr.f32.gmra.mrb[0].mxu0 %v350
        %v572 = vpop.f32.mrb[0].mxu0
        %v573 = vadd.f32 0.0, %v572
        %v574 = vpop.f32.mrb[0].mxu0
        %575 = vmatprep.mubr.f32.mxu0 0.0
        %576 = vmatmul.mubr.f32.gmra.mrb[0].mxu0 %v351
        %v577 = vpop.f32.mrb[0].mxu0
        %v578 = vadd.f32 0.0, %v577
        %v579 = vpop.f32.mrb[0].mxu0
        %580 = vmatprep.mubr.f32.mxu0 0.0
        %581 = vmatmul.mubr.f32.gmra.mrb[0].mxu0 %v352
        %v582 = vpop.f32.mrb[0].mxu0
        %v583 = vadd.f32 0.0, %v582
        %v584 = vpop.f32.mrb[0].mxu0
        %585 = vmatprep.mubr.f32.mxu0 0.0
        %586 = vmatmul.mubr.f32.gmra.mrb[0].mxu0 %v353
        %v587 = vpop.f32.mrb[0].mxu0
        %v588 = vadd.f32 0.0, %v587
        %v589 = vpop.f32.mrb[0].mxu0
        %590 = vmatprep.mubr.f32.mxu0 0.0
        %591 = vmatmul.mubr.f32.gmra.mrb[0].mxu0 %v354
        %v592 = vpop.f32.mrb[0].mxu0
        %v593 = vadd.f32 0.0, %v592
        %v594 = vpop.f32.mrb[0].mxu0
        %595 = vmatprep.mubr.f32.mxu0 0.0
        %596 = vmatmul.mubr.f32.gmra.mrb[0].mxu0 %v355
        %v597 = vpop.f32.mrb[0].mxu0
        %v598 = vadd.f32 0.0, %v597
        %v599 = vpop.f32.mrb[0].mxu0
        %600 = vmatprep.mubr.f32.mxu0 0.0
        %601 = vmatmul.mubr.f32.gmra.mrb[0].mxu0 %v356
        %v602 = vpop.f32.mrb[0].mxu0
        %v603 = vadd.f32 0.0, %v602
        %v604 = vpop.f32.mrb[0].mxu0
        %605 = vmatprep.mubr.f32.mxu0 0.0
        %606 = vmatmul.mubr.f32.gmra.mrb[0].mxu0 %v357
        %v607 = vpop.f32.mrb[0].mxu0
        %v608 = vadd.f32 0.0, %v607
        %v609 = vpop.f32.mrb[0].mxu0
        %610 = vmatprep.mubr.f32.mxu0 0.0
        %611 = vmatmul.mubr.f32.gmra.mrb[0].mxu0 %v358
        %v612 = vpop.f32.mrb[0].mxu0
        %v613 = vadd.f32 0.0, %v612
        %v614 = vpop.f32.mrb[0].mxu0
        %615 = vdwg.mxu0
        %616 = vmax.xlane.f32.xlu0 %v458
        %v617 = vpop.xlane.xlu0 %616
        %618 = vmax.xlane.f32.xlu0 %v463
        %v619 = vpop.xlane.xlu0 %618
        %620 = vmax.xlane.f32.xlu0 %v468
        %v621 = vpop.xlane.xlu0 %620
        %622 = vmax.xlane.f32.xlu0 %v473
        %v623 = vpop.xlane.xlu0 %622
        %624 = vmax.xlane.f32.xlu0 %v478
        %v625 = vpop.xlane.xlu0 %624
        %626 = vmax.xlane.f32.xlu0 %v483
        %v627 = vpop.xlane.xlu0 %626
        %628 = vmax.xlane.f32.xlu0 %v488
        %v629 = vpop.xlane.xlu0 %628
        %630 = vmax.xlane.f32.xlu0 %v493
        %v631 = vpop.xlane.xlu0 %630
        %632 = vmax.xlane.f32.xlu0 %v498
        %v633 = vpop.xlane.xlu0 %632
        %634 = vmax.xlane.f32.xlu0 %v503
        %v635 = vpop.xlane.xlu0 %634
        %636 = vmax.xlane.f32.xlu0 %v508
        %v637 = vpop.xlane.xlu0 %636
        %638 = vmax.xlane.f32.xlu0 %v513
        %v639 = vpop.xlane.xlu0 %638
        %640 = vmax.xlane.f32.xlu0 %v518
        %v641 = vpop.xlane.xlu0 %640
        %642 = vmax.xlane.f32.xlu0 %v523
        %v643 = vpop.xlane.xlu0 %642
        %644 = vmax.xlane.f32.xlu0 %v528
        %v645 = vpop.xlane.xlu0 %644
        %646 = vmax.xlane.f32.xlu0 %v533
        %v647 = vpop.xlane.xlu0 %646
        %648 = vmax.xlane.f32.xlu0 %v538
        %v649 = vpop.xlane.xlu0 %648
        %650 = vmax.xlane.f32.xlu0 %v543
        %v651 = vpop.xlane.xlu0 %650
        %652 = vmax.xlane.f32.xlu0 %v548
        %v653 = vpop.xlane.xlu0 %652
        %654 = vmax.xlane.f32.xlu0 %v553
        %v655 = vpop.xlane.xlu0 %654
        %656 = vmax.xlane.f32.xlu0 %v558
        %v657 = vpop.xlane.xlu0 %656
        %658 = vmax.xlane.f32.xlu0 %v563
        %v659 = vpop.xlane.xlu0 %658
        %660 = vmax.xlane.f32.xlu0 %v568
        %v661 = vpop.xlane.xlu0 %660
        %662 = vmax.xlane.f32.xlu0 %v573
        %v663 = vpop.xlane.xlu0 %662
        %664 = vmax.xlane.f32.xlu0 %v578
        %v665 = vpop.xlane.xlu0 %664
        %666 = vmax.xlane.f32.xlu0 %v583
        %v667 = vpop.xlane.xlu0 %666
        %668 = vmax.xlane.f32.xlu0 %v588
        %v669 = vpop.xlane.xlu0 %668
        %670 = vmax.xlane.f32.xlu0 %v593
        %v671 = vpop.xlane.xlu0 %670
        %672 = vmax.xlane.f32.xlu0 %v598
        %v673 = vpop.xlane.xlu0 %672
        %674 = vmax.xlane.f32.xlu0 %v603
        %v675 = vpop.xlane.xlu0 %674
        %676 = vmax.xlane.f32.xlu0 %v608
        %v677 = vpop.xlane.xlu0 %676
        %678 = vmax.xlane.f32.xlu0 %v613
        %v679 = vpop.xlane.xlu0 %678
        %v680 = vsub.f32 %v458, %v617
        %v681 = vsub.f32 %v463, %v619
        %v682 = vsub.f32 %v468, %v621
        %v683 = vsub.f32 %v473, %v623
        %v684 = vsub.f32 %v478, %v625
        %v685 = vsub.f32 %v483, %v627
        %v686 = vsub.f32 %v488, %v629
        %v687 = vsub.f32 %v493, %v631
        %v688 = vsub.f32 %v498, %v633
        %v689 = vsub.f32 %v503, %v635
        %v690 = vsub.f32 %v508, %v637
        %v691 = vsub.f32 %v513, %v639
        %v692 = vsub.f32 %v518, %v641
        %v693 = vsub.f32 %v523, %v643
        %v694 = vsub.f32 %v528, %v645
        %v695 = vsub.f32 %v533, %v647
        %v696 = vsub.f32 %v538, %v649
        %v697 = vsub.f32 %v543, %v651
        %v698 = vsub.f32 %v548, %v653
        %v699 = vsub.f32 %v553, %v655
        %v700 = vsub.f32 %v558, %v657
        %v701 = vsub.f32 %v563, %v659
        %v702 = vsub.f32 %v568, %v661
        %v703 = vsub.f32 %v573, %v663
        %v704 = vsub.f32 %v578, %v665
        %v705 = vsub.f32 %v583, %v667
        %v706 = vsub.f32 %v588, %v669
        %v707 = vsub.f32 %v593, %v671
        %v708 = vsub.f32 %v598, %v673
        %v709 = vsub.f32 %v603, %v675
        %v710 = vsub.f32 %v608, %v677
        %v711 = vsub.f32 %v613, %v679
        %v712 = vmul.f32 %v680, 1.442695
        %v713 = vpow.pop %v712
        %v714 = vmul.f32 %v681, 1.442695
        %v715 = vpow.pop %v714
        %v716 = vmul.f32 %v682, 1.442695
        %v717 = vpow.pop %v716
        %v718 = vmul.f32 %v683, 1.442695
        %v719 = vpow.pop %v718
        %v720 = vmul.f32 %v684, 1.442695
        %v721 = vpow.pop %v720
        %v722 = vmul.f32 %v685, 1.442695
        %v723 = vpow.pop %v722
        %v724 = vmul.f32 %v686, 1.442695
        %v725 = vpow.pop %v724
        %v726 = vmul.f32 %v687, 1.442695
        %v727 = vpow.pop %v726
        %v728 = vmul.f32 %v688, 1.442695
        %v729 = vpow.pop %v728
        %v730 = vmul.f32 %v689, 1.442695
        %v731 = vpow.pop %v730
        %v732 = vmul.f32 %v690, 1.442695
        %v733 = vpow.pop %v732
        %v734 = vmul.f32 %v691, 1.442695
        %v735 = vpow.pop %v734
        %v736 = vmul.f32 %v692, 1.442695
        %v737 = vpow.pop %v736
        %v738 = vmul.f32 %v693, 1.442695
        %v739 = vpow.pop %v738
        %v740 = vmul.f32 %v694, 1.442695
        %v741 = vpow.pop %v740
        %v742 = vmul.f32 %v695, 1.442695
        %v743 = vpow.pop %v742
        %v744 = vmul.f32 %v696, 1.442695
        %v745 = vpow.pop %v744
        %v746 = vmul.f32 %v697, 1.442695
        %v747 = vpow.pop %v746
        %v748 = vmul.f32 %v698, 1.442695
        %v749 = vpow.pop %v748
        %v750 = vmul.f32 %v699, 1.442695
        %v751 = vpow.pop %v750
        %v752 = vmul.f32 %v700, 1.442695
        %v753 = vpow.pop %v752
        %v754 = vmul.f32 %v701, 1.442695
        %v755 = vpow.pop %v754
        %v756 = vmul.f32 %v702, 1.442695
        %v757 = vpow.pop %v756
        %v758 = vmul.f32 %v703, 1.442695
        %v759 = vpow.pop %v758
        %v760 = vmul.f32 %v704, 1.442695
        %v761 = vpow.pop %v760
        %v762 = vmul.f32 %v705, 1.442695
        %v763 = vpow.pop %v762
        %v764 = vmul.f32 %v706, 1.442695
        %v765 = vpow.pop %v764
        %v766 = vmul.f32 %v707, 1.442695
        %v767 = vpow.pop %v766
        %v768 = vmul.f32 %v708, 1.442695
        %v769 = vpow.pop %v768
        %v770 = vmul.f32 %v709, 1.442695
        %v771 = vpow.pop %v770
        %v772 = vmul.f32 %v710, 1.442695
        %v773 = vpow.pop %v772
        %v774 = vmul.f32 %v711, 1.442695
        %v775 = vpow.pop %v774
        %776 = vadd.xlane.f32.xlu0 %v713
        %v777 = vpop.xlane.xlu0 %776
        %778 = vadd.xlane.f32.xlu0 %v715
        %v779 = vpop.xlane.xlu0 %778
        %780 = vadd.xlane.f32.xlu0 %v717
        %v781 = vpop.xlane.xlu0 %780
        %782 = vadd.xlane.f32.xlu0 %v719
        %v783 = vpop.xlane.xlu0 %782
        %784 = vadd.xlane.f32.xlu0 %v721
        %v785 = vpop.xlane.xlu0 %784
        %786 = vadd.xlane.f32.xlu0 %v723
        %v787 = vpop.xlane.xlu0 %786
        %788 = vadd.xlane.f32.xlu0 %v725
        %v789 = vpop.xlane.xlu0 %788
        %790 = vadd.xlane.f32.xlu0 %v727
        %v791 = vpop.xlane.xlu0 %790
        %792 = vadd.xlane.f32.xlu0 %v729
        %v793 = vpop.xlane.xlu0 %792
        %794 = vadd.xlane.f32.xlu0 %v731
        %v795 = vpop.xlane.xlu0 %794
        %796 = vadd.xlane.f32.xlu0 %v733
        %v797 = vpop.xlane.xlu0 %796
        %798 = vadd.xlane.f32.xlu0 %v735
        %v799 = vpop.xlane.xlu0 %798
        %800 = vadd.xlane.f32.xlu0 %v737
        %v801 = vpop.xlane.xlu0 %800
        %802 = vadd.xlane.f32.xlu0 %v739
        %v803 = vpop.xlane.xlu0 %802
        %804 = vadd.xlane.f32.xlu0 %v741
        %v805 = vpop.xlane.xlu0 %804
        %806 = vadd.xlane.f32.xlu0 %v743
        %v807 = vpop.xlane.xlu0 %806
        %808 = vadd.xlane.f32.xlu0 %v745
        %v809 = vpop.xlane.xlu0 %808
        %810 = vadd.xlane.f32.xlu0 %v747
        %v811 = vpop.xlane.xlu0 %810
        %812 = vadd.xlane.f32.xlu0 %v749
        %v813 = vpop.xlane.xlu0 %812
        %814 = vadd.xlane.f32.xlu0 %v751
        %v815 = vpop.xlane.xlu0 %814
        %816 = vadd.xlane.f32.xlu0 %v753
        %v817 = vpop.xlane.xlu0 %816
        %818 = vadd.xlane.f32.xlu0 %v755
        %v819 = vpop.xlane.xlu0 %818
        %820 = vadd.xlane.f32.xlu0 %v757
        %v821 = vpop.xlane.xlu0 %820
        %822 = vadd.xlane.f32.xlu0 %v759
        %v823 = vpop.xlane.xlu0 %822
        %824 = vadd.xlane.f32.xlu0 %v761
        %v825 = vpop.xlane.xlu0 %824
        %826 = vadd.xlane.f32.xlu0 %v763
        %v827 = vpop.xlane.xlu0 %826
        %828 = vadd.xlane.f32.xlu0 %v765
        %v829 = vpop.xlane.xlu0 %828
        %830 = vadd.xlane.f32.xlu0 %v767
        %v831 = vpop.xlane.xlu0 %830
        %832 = vadd.xlane.f32.xlu0 %v769
        %v833 = vpop.xlane.xlu0 %832
        %834 = vadd.xlane.f32.xlu0 %v771
        %v835 = vpop.xlane.xlu0 %834
        %836 = vadd.xlane.f32.xlu0 %v773
        %v837 = vpop.xlane.xlu0 %836
        %838 = vadd.xlane.f32.xlu0 %v775
        %v839 = vpop.xlane.xlu0 %838
        %v840 = vrcp.pop %v777
        %v841 = vmul.f32 1.0, %v840
        %v842 = vrcp.pop %v779
        %v843 = vmul.f32 1.0, %v842
        %v844 = vrcp.pop %v781
        %v845 = vmul.f32 1.0, %v844
        %v846 = vrcp.pop %v783
        %v847 = vmul.f32 1.0, %v846
        %v848 = vrcp.pop %v785
        %v849 = vmul.f32 1.0, %v848
        %v850 = vrcp.pop %v787
        %v851 = vmul.f32 1.0, %v850
        %v852 = vrcp.pop %v789
        %v853 = vmul.f32 1.0, %v852
        %v854 = vrcp.pop %v791
        %v855 = vmul.f32 1.0, %v854
        %v856 = vrcp.pop %v793
        %v857 = vmul.f32 1.0, %v856
        %v858 = vrcp.pop %v795
        %v859 = vmul.f32 1.0, %v858
        %v860 = vrcp.pop %v797
        %v861 = vmul.f32 1.0, %v860
        %v862 = vrcp.pop %v799
        %v863 = vmul.f32 1.0, %v862
        %v864 = vrcp.pop %v801
        %v865 = vmul.f32 1.0, %v864
        %v866 = vrcp.pop %v803
        %v867 = vmul.f32 1.0, %v866
        %v868 = vrcp.pop %v805
        %v869 = vmul.f32 1.0, %v868
        %v870 = vrcp.pop %v807
        %v871 = vmul.f32 1.0, %v870
        %v872 = vrcp.pop %v809
        %v873 = vmul.f32 1.0, %v872
        %v874 = vrcp.pop %v811
        %v875 = vmul.f32 1.0, %v874
        %v876 = vrcp.pop %v813
        %v877 = vmul.f32 1.0, %v876
        %v878 = vrcp.pop %v815
        %v879 = vmul.f32 1.0, %v878
        %v880 = vrcp.pop %v817
        %v881 = vmul.f32 1.0, %v880
        %v882 = vrcp.pop %v819
        %v883 = vmul.f32 1.0, %v882
        %v884 = vrcp.pop %v821
        %v885 = vmul.f32 1.0, %v884
        %v886 = vrcp.pop %v823
        %v887 = vmul.f32 1.0, %v886
        %v888 = vrcp.pop %v825
        %v889 = vmul.f32 1.0, %v888
        %v890 = vrcp.pop %v827
        %v891 = vmul.f32 1.0, %v890
        %v892 = vrcp.pop %v829
        %v893 = vmul.f32 1.0, %v892
        %v894 = vrcp.pop %v831
        %v895 = vmul.f32 1.0, %v894
        %v896 = vrcp.pop %v833
        %v897 = vmul.f32 1.0, %v896
        %v898 = vrcp.pop %v835
        %v899 = vmul.f32 1.0, %v898
        %v900 = vrcp.pop %v837
        %v901 = vmul.f32 1.0, %v900
        %v902 = vrcp.pop %v839
        %v903 = vmul.f32 1.0, %v902
        %v904 = vmul.f32 %v713, %v841
        %v905 = vmul.f32 %v715, %v843
        %v906 = vmul.f32 %v717, %v845
        %v907 = vmul.f32 %v719, %v847
        %v908 = vmul.f32 %v721, %v849
        %v909 = vmul.f32 %v723, %v851
        %v910 = vmul.f32 %v725, %v853
        %v911 = vmul.f32 %v727, %v855
        %v912 = vmul.f32 %v729, %v857
        %v913 = vmul.f32 %v731, %v859
        %v914 = vmul.f32 %v733, %v861
        %v915 = vmul.f32 %v735, %v863
        %v916 = vmul.f32 %v737, %v865
        %v917 = vmul.f32 %v739, %v867
        %v918 = vmul.f32 %v741, %v869
        %v919 = vmul.f32 %v743, %v871
        %v920 = vmul.f32 %v745, %v873
        %v921 = vmul.f32 %v747, %v875
        %v922 = vmul.f32 %v749, %v877
        %v923 = vmul.f32 %v751, %v879
        %v924 = vmul.f32 %v753, %v881
        %v925 = vmul.f32 %v755, %v883
        %v926 = vmul.f32 %v757, %v885
        %v927 = vmul.f32 %v759, %v887
        %v928 = vmul.f32 %v761, %v889
        %v929 = vmul.f32 %v763, %v891
        %v930 = vmul.f32 %v765, %v893
        %v931 = vmul.f32 %v767, %v895
        %v932 = vmul.f32 %v769, %v897
        %v933 = vmul.f32 %v771, %v899
        %v934 = vmul.f32 %v773, %v901
        %v935 = vmul.f32 %v775, %v903
        %936 = vst [vmem:[%s323] sm:$0xff] %v904
        %937 = vst [vmem:[%s323 + $0x8] sm:$0xff] %v905
        %938 = vst [vmem:[%s323 + $0x10] sm:$0xff] %v906
        %939 = vst [vmem:[%s323 + $0x18] sm:$0xff] %v907
        %940 = vst [vmem:[%s323 + $0x20] sm:$0xff] %v908
        %941 = vst [vmem:[%s323 + $0x28] sm:$0xff] %v909
        %942 = vst [vmem:[%s323 + $0x30] sm:$0xff] %v910
        %943 = vst [vmem:[%s323 + $0x38] sm:$0xff] %v911
        %944 = vst [vmem:[%s323 + $0x40] sm:$0xff] %v912
        %945 = vst [vmem:[%s323 + $0x48] sm:$0xff] %v913
        %946 = vst [vmem:[%s323 + $0x50] sm:$0xff] %v914
        %947 = vst [vmem:[%s323 + $0x58] sm:$0xff] %v915
        %948 = vst [vmem:[%s323 + $0x60] sm:$0xff] %v916
        %949 = vst [vmem:[%s323 + $0x68] sm:$0xff] %v917
        %950 = vst [vmem:[%s323 + $0x70] sm:$0xff] %v918
        %951 = vst [vmem:[%s323 + $0x78] sm:$0xff] %v919
        %952 = vst [vmem:[%s323 + $0x80] sm:$0xff] %v920
        %953 = vst [vmem:[%s323 + $0x88] sm:$0xff] %v921
        %954 = vst [vmem:[%s323 + $0x90] sm:$0xff] %v922
        %955 = vst [vmem:[%s323 + $0x98] sm:$0xff] %v923
        %956 = vst [vmem:[%s323 + $0xa0] sm:$0xff] %v924
        %957 = vst [vmem:[%s323 + $0xa8] sm:$0xff] %v925
        %958 = vst [vmem:[%s323 + $0xb0] sm:$0xff] %v926
        %959 = vst [vmem:[%s323 + $0xb8] sm:$0xff] %v927
        %960 = vst [vmem:[%s323 + $0xc0] sm:$0xff] %v928
        %961 = vst [vmem:[%s323 + $0xc8] sm:$0xff] %v929
        %962 = vst [vmem:[%s323 + $0xd0] sm:$0xff] %v930
        %963 = vst [vmem:[%s323 + $0xd8] sm:$0xff] %v931
        %964 = vst [vmem:[%s323 + $0xe0] sm:$0xff] %v932
        %965 = vst [vmem:[%s323 + $0xe8] sm:$0xff] %v933
        %966 = vst [vmem:[%s323 + $0xf0] sm:$0xff] %v934
        %967 = vst [vmem:[%s323 + $0xf8] sm:$0xff] %v935
        %968 = vmatprep.subr.mxu0 0.0
        %969 = vmatpush1.msra.mxu0 %v375
        %970 = vmatprep.subr.mxu0 0.0
        %971 = vmatpush1.msra.mxu0 %v376
        %972 = vmatprep.subr.mxu0 0.0
        %973 = vmatpush1.msra.mxu0 %v377
        %974 = vmatprep.subr.mxu0 0.0
        %975 = vmatpush1.msra.mxu0 %v378
        %976 = vmatprep.subr.mxu0 0.0
        %977 = vmatpush1.msra.mxu0 %v379
        %978 = vmatprep.subr.mxu0 0.0
        %979 = vmatpush1.msra.mxu0 %v380
        %980 = vmatprep.subr.mxu0 0.0
        %981 = vmatpush1.msra.mxu0 %v381
        %982 = vmatprep.subr.mxu0 0.0
        %983 = vmatpush1.msra.mxu0 %v382
        %984 = vmatprep.subr.mxu0 0.0
        %985 = vmatpush1.msra.mxu0 %v383
        %986 = vmatprep.subr.mxu0 0.0
        %987 = vmatpush1.msra.mxu0 %v384
        %988 = vmatprep.subr.mxu0 0.0
        %989 = vmatpush1.msra.mxu0 %v385
        %990 = vmatprep.subr.mxu0 0.0
        %991 = vmatpush1.msra.mxu0 %v386
        %992 = vmatprep.subr.mxu0 0.0
        %993 = vmatpush1.msra.mxu0 %v387
        %994 = vmatprep.subr.mxu0 0.0
        %995 = vmatpush1.msra.mxu0 %v388
        %996 = vmatprep.subr.mxu0 0.0
        %997 = vmatpush1.msra.mxu0 %v389
        %998 = vmatprep.subr.mxu0 0.0
        %999 = vmatpush1.msra.mxu0 %v390
        %1000 = vmatprep.subr.mxu0 0.0
        %1001 = vmatpush1.msra.mxu0 0.0
        %1002 = vmatprep.subr.mxu0 0.0
        %1003 = vmatpush1.msra.mxu0 0.0
        %1004 = vmatprep.subr.mxu0 0.0
        %1005 = vmatpush1.msra.mxu0 0.0
        %1006 = vmatprep.subr.mxu0 0.0
        %1007 = vmatpush1.msra.mxu0 0.0
        %1008 = vmatprep.subr.mxu0 0.0
        %1009 = vmatpush1.msra.mxu0 0.0
        %1010 = vmatprep.subr.mxu0 0.0
        %1011 = vmatpush1.msra.mxu0 0.0
        %1012 = vmatprep.subr.mxu0 0.0
        %1013 = vmatpush1.msra.mxu0 0.0
        %1014 = vmatprep.subr.mxu0 0.0
        %1015 = vmatpush1.msra.mxu0 0.0
        %1016 = vmatprep.subr.mxu0 0.0
        %1017 = vmatpush1.msra.mxu0 0.0
        %1018 = vmatprep.subr.mxu0 0.0
        %1019 = vmatpush1.msra.mxu0 0.0
        %1020 = vmatprep.subr.mxu0 0.0
        %1021 = vmatpush1.msra.mxu0 0.0
        %1022 = vmatprep.subr.mxu0 0.0
        %1023 = vmatpush1.msra.mxu0 0.0
        %1024 = vmatprep.subr.mxu0 0.0
        %1025 = vmatpush1.msra.mxu0 0.0
        %1026 = vmatprep.subr.mxu0 0.0
        %1027 = vmatpush1.msra.mxu0 0.0
        %1028 = vmatprep.subr.mxu0 0.0
        %1029 = vmatpush1.msra.mxu0 0.0
        %1030 = vmatprep.subr.mxu0 0.0
        %1031 = vmatpush1.msra.mxu0 0.0
        %1032 = vmatprep.mubr.f32.mxu0 0.0
        %1033 = vmatmul.mubr.f32.gmra.mrb[0].mxu0 %v713
        %v1034 = vpop.f32.mrb[0].mxu0
        %v1035 = vadd.f32 0.0, %v1034
        %v1036 = vpop.f32.mrb[0].mxu0
        %1037 = vmatprep.mubr.f32.mxu0 0.0
        %1038 = vmatmul.mubr.f32.gmra.mrb[0].mxu0 %v715
        %v1039 = vpop.f32.mrb[0].mxu0
        %v1040 = vadd.f32 0.0, %v1039
        %v1041 = vpop.f32.mrb[0].mxu0
        %1042 = vmatprep.mubr.f32.mxu0 0.0
        %1043 = vmatmul.mubr.f32.gmra.mrb[0].mxu0 %v717
        %v1044 = vpop.f32.mrb[0].mxu0
        %v1045 = vadd.f32 0.0, %v1044
        %v1046 = vpop.f32.mrb[0].mxu0
        %1047 = vmatprep.mubr.f32.mxu0 0.0
        %1048 = vmatmul.mubr.f32.gmra.mrb[0].mxu0 %v719
        %v1049 = vpop.f32.mrb[0].mxu0
        %v1050 = vadd.f32 0.0, %v1049
        %v1051 = vpop.f32.mrb[0].mxu0
        %1052 = vmatprep.mubr.f32.mxu0 0.0
        %1053 = vmatmul.mubr.f32.gmra.mrb[0].mxu0 %v721
        %v1054 = vpop.f32.mrb[0].mxu0
        %v1055 = vadd.f32 0.0, %v1054
        %v1056 = vpop.f32.mrb[0].mxu0
        %1057 = vmatprep.mubr.f32.mxu0 0.0
        %1058 = vmatmul.mubr.f32.gmra.mrb[0].mxu0 %v723
        %v1059 = vpop.f32.mrb[0].mxu0
        %v1060 = vadd.f32 0.0, %v1059
        %v1061 = vpop.f32.mrb[0].mxu0
        %1062 = vmatprep.mubr.f32.mxu0 0.0
        %1063 = vmatmul.mubr.f32.gmra.mrb[0].mxu0 %v725
        %v1064 = vpop.f32.mrb[0].mxu0
        %v1065 = vadd.f32 0.0, %v1064
        %v1066 = vpop.f32.mrb[0].mxu0
        %1067 = vmatprep.mubr.f32.mxu0 0.0
        %1068 = vmatmul.mubr.f32.gmra.mrb[0].mxu0 %v727
        %v1069 = vpop.f32.mrb[0].mxu0
        %v1070 = vadd.f32 0.0, %v1069
        %v1071 = vpop.f32.mrb[0].mxu0
        %1072 = vmatprep.mubr.f32.mxu0 0.0
        %1073 = vmatmul.mubr.f32.gmra.mrb[0].mxu0 %v729
        %v1074 = vpop.f32.mrb[0].mxu0
        %v1075 = vadd.f32 0.0, %v1074
        %v1076 = vpop.f32.mrb[0].mxu0
        %1077 = vmatprep.mubr.f32.mxu0 0.0
        %1078 = vmatmul.mubr.f32.gmra.mrb[0].mxu0 %v731
        %v1079 = vpop.f32.mrb[0].mxu0
        %v1080 = vadd.f32 0.0, %v1079
        %v1081 = vpop.f32.mrb[0].mxu0
        %1082 = vmatprep.mubr.f32.mxu0 0.0
        %1083 = vmatmul.mubr.f32.gmra.mrb[0].mxu0 %v733
        %v1084 = vpop.f32.mrb[0].mxu0
        %v1085 = vadd.f32 0.0, %v1084
        %v1086 = vpop.f32.mrb[0].mxu0
        %1087 = vmatprep.mubr.f32.mxu0 0.0
        %1088 = vmatmul.mubr.f32.gmra.mrb[0].mxu0 %v735
        %v1089 = vpop.f32.mrb[0].mxu0
        %v1090 = vadd.f32 0.0, %v1089
        %v1091 = vpop.f32.mrb[0].mxu0
        %1092 = vmatprep.mubr.f32.mxu0 0.0
        %1093 = vmatmul.mubr.f32.gmra.mrb[0].mxu0 %v737
        %v1094 = vpop.f32.mrb[0].mxu0
        %v1095 = vadd.f32 0.0, %v1094
        %v1096 = vpop.f32.mrb[0].mxu0
        %1097 = vmatprep.mubr.f32.mxu0 0.0
        %1098 = vmatmul.mubr.f32.gmra.mrb[0].mxu0 %v739
        %v1099 = vpop.f32.mrb[0].mxu0
        %v1100 = vadd.f32 0.0, %v1099
        %v1101 = vpop.f32.mrb[0].mxu0
        %1102 = vmatprep.mubr.f32.mxu0 0.0
        %1103 = vmatmul.mubr.f32.gmra.mrb[0].mxu0 %v741
        %v1104 = vpop.f32.mrb[0].mxu0
        %v1105 = vadd.f32 0.0, %v1104
        %v1106 = vpop.f32.mrb[0].mxu0
        %1107 = vmatprep.mubr.f32.mxu0 0.0
        %1108 = vmatmul.mubr.f32.gmra.mrb[0].mxu0 %v743
        %v1109 = vpop.f32.mrb[0].mxu0
        %v1110 = vadd.f32 0.0, %v1109
        %v1111 = vpop.f32.mrb[0].mxu0
        %1112 = vmatprep.mubr.f32.mxu0 0.0
        %1113 = vmatmul.mubr.f32.gmra.mrb[0].mxu0 %v745
        %v1114 = vpop.f32.mrb[0].mxu0
        %v1115 = vadd.f32 0.0, %v1114
        %v1116 = vpop.f32.mrb[0].mxu0
        %1117 = vmatprep.mubr.f32.mxu0 0.0
        %1118 = vmatmul.mubr.f32.gmra.mrb[0].mxu0 %v747
        %v1119 = vpop.f32.mrb[0].mxu0
        %v1120 = vadd.f32 0.0, %v1119
        %v1121 = vpop.f32.mrb[0].mxu0
        %1122 = vmatprep.mubr.f32.mxu0 0.0
        %1123 = vmatmul.mubr.f32.gmra.mrb[0].mxu0 %v749
        %v1124 = vpop.f32.mrb[0].mxu0
        %v1125 = vadd.f32 0.0, %v1124
        %v1126 = vpop.f32.mrb[0].mxu0
        %1127 = vmatprep.mubr.f32.mxu0 0.0
        %1128 = vmatmul.mubr.f32.gmra.mrb[0].mxu0 %v751
        %v1129 = vpop.f32.mrb[0].mxu0
        %v1130 = vadd.f32 0.0, %v1129
        %v1131 = vpop.f32.mrb[0].mxu0
        %1132 = vmatprep.mubr.f32.mxu0 0.0
        %1133 = vmatmul.mubr.f32.gmra.mrb[0].mxu0 %v753
        %v1134 = vpop.f32.mrb[0].mxu0
        %v1135 = vadd.f32 0.0, %v1134
        %v1136 = vpop.f32.mrb[0].mxu0
        %1137 = vmatprep.mubr.f32.mxu0 0.0
        %1138 = vmatmul.mubr.f32.gmra.mrb[0].mxu0 %v755
        %v1139 = vpop.f32.mrb[0].mxu0
        %v1140 = vadd.f32 0.0, %v1139
        %v1141 = vpop.f32.mrb[0].mxu0
        %1142 = vmatprep.mubr.f32.mxu0 0.0
        %1143 = vmatmul.mubr.f32.gmra.mrb[0].mxu0 %v757
        %v1144 = vpop.f32.mrb[0].mxu0
        %v1145 = vadd.f32 0.0, %v1144
        %v1146 = vpop.f32.mrb[0].mxu0
        %1147 = vmatprep.mubr.f32.mxu0 0.0
        %1148 = vmatmul.mubr.f32.gmra.mrb[0].mxu0 %v759
        %v1149 = vpop.f32.mrb[0].mxu0
        %v1150 = vadd.f32 0.0, %v1149
        %v1151 = vpop.f32.mrb[0].mxu0
        %1152 = vmatprep.mubr.f32.mxu0 0.0
        %1153 = vmatmul.mubr.f32.gmra.mrb[0].mxu0 %v761
        %v1154 = vpop.f32.mrb[0].mxu0
        %v1155 = vadd.f32 0.0, %v1154
        %v1156 = vpop.f32.mrb[0].mxu0
        %1157 = vmatprep.mubr.f32.mxu0 0.0
        %1158 = vmatmul.mubr.f32.gmra.mrb[0].mxu0 %v763
        %v1159 = vpop.f32.mrb[0].mxu0
        %v1160 = vadd.f32 0.0, %v1159
        %v1161 = vpop.f32.mrb[0].mxu0
        %1162 = vmatprep.mubr.f32.mxu0 0.0
        %1163 = vmatmul.mubr.f32.gmra.mrb[0].mxu0 %v765
        %v1164 = vpop.f32.mrb[0].mxu0
        %v1165 = vadd.f32 0.0, %v1164
        %v1166 = vpop.f32.mrb[0].mxu0
        %1167 = vmatprep.mubr.f32.mxu0 0.0
        %1168 = vmatmul.mubr.f32.gmra.mrb[0].mxu0 %v767
        %v1169 = vpop.f32.mrb[0].mxu0
        %v1170 = vadd.f32 0.0, %v1169
        %v1171 = vpop.f32.mrb[0].mxu0
        %1172 = vmatprep.mubr.f32.mxu0 0.0
        %1173 = vmatmul.mubr.f32.gmra.mrb[0].mxu0 %v769
        %v1174 = vpop.f32.mrb[0].mxu0
        %v1175 = vadd.f32 0.0, %v1174
        %v1176 = vpop.f32.mrb[0].mxu0
        %1177 = vmatprep.mubr.f32.mxu0 0.0
        %1178 = vmatmul.mubr.f32.gmra.mrb[0].mxu0 %v771
        %v1179 = vpop.f32.mrb[0].mxu0
        %v1180 = vadd.f32 0.0, %v1179
        %v1181 = vpop.f32.mrb[0].mxu0
        %1182 = vmatprep.mubr.f32.mxu0 0.0
        %1183 = vmatmul.mubr.f32.gmra.mrb[0].mxu0 %v773
        %v1184 = vpop.f32.mrb[0].mxu0
        %v1185 = vadd.f32 0.0, %v1184
        %v1186 = vpop.f32.mrb[0].mxu0
        %1187 = vmatprep.mubr.f32.mxu0 0.0
        %1188 = vmatmul.mubr.f32.gmra.mrb[0].mxu0 %v775
        %v1189 = vpop.f32.mrb[0].mxu0
        %v1190 = vadd.f32 0.0, %v1189
        %v1191 = vpop.f32.mrb[0].mxu0
        %1192 = vdwg.mxu0
        %v1193 = vmul.f32 %v1035, %v841
        %v1194 = vmul.f32 %v1040, %v843
        %v1195 = vmul.f32 %v1045, %v845
        %v1196 = vmul.f32 %v1050, %v847
        %v1197 = vmul.f32 %v1055, %v849
        %v1198 = vmul.f32 %v1060, %v851
        %v1199 = vmul.f32 %v1065, %v853
        %v1200 = vmul.f32 %v1070, %v855
        %v1201 = vmul.f32 %v1075, %v857
        %v1202 = vmul.f32 %v1080, %v859
        %v1203 = vmul.f32 %v1085, %v861
        %v1204 = vmul.f32 %v1090, %v863
        %v1205 = vmul.f32 %v1095, %v865
        %v1206 = vmul.f32 %v1100, %v867
        %v1207 = vmul.f32 %v1105, %v869
        %v1208 = vmul.f32 %v1110, %v871
        %v1209 = vmul.f32 %v1115, %v873
        %v1210 = vmul.f32 %v1120, %v875
        %v1211 = vmul.f32 %v1125, %v877
        %v1212 = vmul.f32 %v1130, %v879
        %v1213 = vmul.f32 %v1135, %v881
        %v1214 = vmul.f32 %v1140, %v883
        %v1215 = vmul.f32 %v1145, %v885
        %v1216 = vmul.f32 %v1150, %v887
        %v1217 = vmul.f32 %v1155, %v889
        %v1218 = vmul.f32 %v1160, %v891
        %v1219 = vmul.f32 %v1165, %v893
        %v1220 = vmul.f32 %v1170, %v895
        %v1221 = vmul.f32 %v1175, %v897
        %v1222 = vmul.f32 %v1180, %v899
        %v1223 = vmul.f32 %v1185, %v901
        %v1224 = vmul.f32 %v1190, %v903
        %1225 = vst [vmem:[%s316] sm:$0xff] %v1193
        %1226 = vst [vmem:[%s316 + $0x8] sm:$0xff] %v1194
        %1227 = vst [vmem:[%s316 + $0x10] sm:$0xff] %v1195
        %1228 = vst [vmem:[%s316 + $0x18] sm:$0xff] %v1196
        %1229 = vst [vmem:[%s316 + $0x20] sm:$0xff] %v1197
        %1230 = vst [vmem:[%s316 + $0x28] sm:$0xff] %v1198
        %1231 = vst [vmem:[%s316 + $0x30] sm:$0xff] %v1199
        %1232 = vst [vmem:[%s316 + $0x38] sm:$0xff] %v1200
        %1233 = vst [vmem:[%s316 + $0x40] sm:$0xff] %v1201
        %1234 = vst [vmem:[%s316 + $0x48] sm:$0xff] %v1202
        %1235 = vst [vmem:[%s316 + $0x50] sm:$0xff] %v1203
        %1236 = vst [vmem:[%s316 + $0x58] sm:$0xff] %v1204
        %1237 = vst [vmem:[%s316 + $0x60] sm:$0xff] %v1205
        %1238 = vst [vmem:[%s316 + $0x68] sm:$0xff] %v1206
        %1239 = vst [vmem:[%s316 + $0x70] sm:$0xff] %v1207
        %1240 = vst [vmem:[%s316 + $0x78] sm:$0xff] %v1208
        %1241 = vst [vmem:[%s316 + $0x80] sm:$0xff] %v1209
        %1242 = vst [vmem:[%s316 + $0x88] sm:$0xff] %v1210
        %1243 = vst [vmem:[%s316 + $0x90] sm:$0xff] %v1211
        %1244 = vst [vmem:[%s316 + $0x98] sm:$0xff] %v1212
        %1245 = vst [vmem:[%s316 + $0xa0] sm:$0xff] %v1213
        %1246 = vst [vmem:[%s316 + $0xa8] sm:$0xff] %v1214
        %1247 = vst [vmem:[%s316 + $0xb0] sm:$0xff] %v1215
        %1248 = vst [vmem:[%s316 + $0xb8] sm:$0xff] %v1216
        %1249 = vst [vmem:[%s316 + $0xc0] sm:$0xff] %v1217
        %1250 = vst [vmem:[%s316 + $0xc8] sm:$0xff] %v1218
        %1251 = vst [vmem:[%s316 + $0xd0] sm:$0xff] %v1219
        %1252 = vst [vmem:[%s316 + $0xd8] sm:$0xff] %v1220
        %1253 = vst [vmem:[%s316 + $0xe0] sm:$0xff] %v1221
        %1254 = vst [vmem:[%s316 + $0xe8] sm:$0xff] %v1222
        %1255 = vst [vmem:[%s316 + $0xf0] sm:$0xff] %v1223
        %1256 = vst [vmem:[%s316 + $0xf8] sm:$0xff] %v1224
        %s1257 = sand.u32 %s130, 1
        %s1258 = scalar_lea.sflag [#allocation4], %s1257
        %s1259 = sand.u32 %s130, 1
        %s1260 = smul.addr %s1259, 256
        %s1261 = scalar_lea.vmem [#allocation8], %s1260
        %s1262 = sand.u32 %s158, 1
        %s1263 = scalar_lea.sflag [#allocation10], %s1262
        %s1264 = sand.u32 %s158, 1
        %s1265 = smul.addr %s1264, 256
        %s1266 = scalar_lea.vmem [#allocation9], %s1265
        // Predicated region
        $region45: #{tpu_custom_call.1} parent=31 // pred_check
          %p1267 = pneg %p140
        $region46: #{tpu_custom_call.1} parent=31 // pred_check_branch
          %1269 = sbr.rel (%p1267) target = $region48
        $region47: #{tpu_custom_call.1} parent=31 // pred_region
          %s1270 = smul.u32 32, %s33
          %s1272 = ssub.s32 4096, 4096
          %1273 = vsyncadd %s1258, %s1272
          %s1274 = smul.addr %s32, 64
          %s1275 = sadd.s32 %s1270, %s1274
          %s1276 = smul.addr %s1275, 128
          %s1277 = scalar_lea.hbm %s3, %s1276
          %s1278 = sshll.u32 %s1261, 4
          %s1279 = int_to_ptr.vmem [resolvable:$true] %s1278
          %1284 = dma.vmem_to_hbm [thread:$0]  %s1279, 4096, %s1277, %s1258, 128, 128, 8
        $region48: #{tpu_custom_call.1} parent=31 // pred_fallthru
          _
        // Predicated region
        $region49: #{tpu_custom_call.1} parent=31 // pred_check
          %p1285 = pneg %p168
        $region50: #{tpu_custom_call.1} parent=31 // pred_check_branch
          %1287 = sbr.rel (%p1285) target = $region52
        $region51: #{tpu_custom_call.1} parent=31 // pred_region
          %s1288 = smul.u32 32, %s33
          %s1290 = ssub.s32 4096, 4096
          %1291 = vsyncadd %s1263, %s1290
          %s1292 = smul.addr %s32, 64
          %s1293 = sadd.s32 %s1288, %s1292
          %s1294 = smul.addr %s1293, 128
          %s1295 = scalar_lea.hbm %s4, %s1294
          %s1296 = sshll.u32 %s1266, 4
          %s1297 = int_to_ptr.vmem [resolvable:$true] %s1296
          %1302 = dma.vmem_to_hbm [thread:$0]  %s1297, 4096, %s1295, %s1263, 128, 128, 8
        $region52: #{tpu_custom_call.1} parent=31 // pred_fallthru
          _
      $region32: #{tpu_custom_call.1} parent=5 // pred_fallthru
        _
      %p1303 = scmp.le.s32.totalorder 2, %s23
      // Predicated region
      $region53: #{tpu_custom_call.1} parent=5 // pred_check
        %p1304 = pneg %p1303
      $region54: #{tpu_custom_call.1} parent=5 // pred_check_branch
        %1306 = sbr.rel (%p1304) target = $region56
      $region55: #{tpu_custom_call.1} parent=5 // pred_region
        %s1307 = ssub.s32 %s23, 2
        // Predicated region
        $region57: #{tpu_custom_call.1} parent=55 // pred_check
          %p1308 = pneg %p146
        $region58: #{tpu_custom_call.1} parent=55 // pred_check_branch
          %1310 = sbr.rel (%p1308) target = $region60
        $region59: #{tpu_custom_call.1} parent=55 // pred_region
          %s1311 = sand.u32 %s131, 1
          %s1312 = scalar_lea.sflag [#allocation4], %s1311
          %s1313 = sand.u32 %s131, 1
          %s1314 = smul.addr %s1313, 256
          %s1315 = scalar_lea.vmem [#allocation8], %s1314
          %1316 = dma.done %s1312, 4096
        $region60: #{tpu_custom_call.1} parent=55 // pred_fallthru
          _
        // Predicated region
        $region61: #{tpu_custom_call.1} parent=55 // pred_check
          %p1317 = pneg %p174
        $region62: #{tpu_custom_call.1} parent=55 // pred_check_branch
          %1319 = sbr.rel (%p1317) target = $region64
        $region63: #{tpu_custom_call.1} parent=55 // pred_region
          %s1320 = sand.u32 %s159, 1
          %s1321 = scalar_lea.sflag [#allocation10], %s1320
          %s1322 = sand.u32 %s159, 1
          %s1323 = smul.addr %s1322, 256
          %s1324 = scalar_lea.vmem [#allocation9], %s1323
          %1325 = dma.done %s1321, 4096
        $region64: #{tpu_custom_call.1} parent=55 // pred_fallthru
          _
      $region56: #{tpu_custom_call.1} parent=5 // pred_fallthru
        _
    $region6: #{tpu_custom_call.1} parent=1 // loop_footer
      %s27 = sadd.s32 1, %s23
    $region7: #{tpu_custom_call.1} parent=1 // loop_footer_branch
      %22 = sbr.rel target = $region3
    $region8: #{tpu_custom_call.1} parent=1 // loop_exit
      _
    %1326 = vsyncpa [#allocation3], 1
    %s1327 = scalar_lea.sflag [#allocation3], 1
    %1328 = vsyncpa %s1327, 1
    %1329 = vsyncpa [#allocation6], 1
    %s1330 = scalar_lea.sflag [#allocation6], 1
    %1331 = vsyncpa %s1330, 1
    %1332 = vsyncpa [#allocation4], 1
    %s1333 = scalar_lea.sflag [#allocation4], 1
    %1334 = vsyncpa %s1333, 1
    %1335 = vsyncpa [#allocation10], 1
    %s1336 = scalar_lea.sflag [#allocation10], 1
    %1337 = vsyncpa %s1336, 1

</llo_original>
